<compile_context>
chip_gen: v6e
topology: v6e:2x2x1
jax: 0.10.0
libtpu: 0.0.40
codegen_flags: <defaults>
</compile_context>

<pallas_src>
import functools
import math

import jax
import jax.numpy as jnp
from jax import lax
from jax.experimental import pallas as pl
from jax.experimental.pallas import tpu as pltpu  # noqa: F401  (TPU backend)

DROPOUT_P = 0.1
_DROP_THRESHOLD = int(DROPOUT_P * (1 << 24))   # keep-test on 24 low bits


def _attn_kernel(q_ref, k_ref, v_ref, mask_ref, o_ref, *, seed):
    # q/k/v: (BH, S, D) f32 in VMEM; mask: (S, S); o: (BH, S, D)
    scale = 1.0 / math.sqrt(q_ref.shape[-1])
    q = q_ref[...] * scale          # scale the small (BH,S,D) tile, not (BH,S,S)
    k = k_ref[...]
    v = v_ref[...]
    m = mask_ref[...]

    # Batched Q.K^T (dot_general with batch dim; no explicit transpose of K).
    s = jnp.einsum("hqd,hkd->hqk", q, k, preferred_element_type=jnp.float32)
    s = s + m[None, :, :]

    # Numerically stable softmax; fold the dropout 1/(1-p) scale into the
    # (approximate, EUP) reciprocal of the denominator.
    s_max = jnp.max(s, axis=-1, keepdims=True)
    e = jnp.exp(s - s_max)
    denom = jnp.sum(e, axis=-1, keepdims=True)
    inv = pl.reciprocal(denom * (1.0 - DROPOUT_P), approx=True)

    # Dropout keep-mask from a counter-based integer hash (interpret-safe,
    # no TPU-only PRNG primitives).  Keep test done on raw integer bits.
    BH, S, _ = s.shape
    hi = lax.broadcasted_iota(jnp.int32, s.shape, 0)
    qi = lax.broadcasted_iota(jnp.int32, s.shape, 1)
    ki = lax.broadcasted_iota(jnp.int32, s.shape, 2)
    x = (hi * (S * S) + qi * S + ki).astype(jnp.uint32)
    x = x + jnp.uint32((seed * 0x9E3779B9) & 0xFFFFFFFF)
    # lowbias32 mixer
    x = x ^ (x >> 16)
    x = x * jnp.uint32(0x7FEB352D)
    x = x ^ (x >> 15)
    x = x * jnp.uint32(0x846CA68B)
    x = x ^ (x >> 16)
    keep = (x & jnp.uint32(0xFFFFFF)) >= jnp.uint32(_DROP_THRESHOLD)

    # Apply softmax normalization + dropout scale + mask in one select.
    p = jnp.where(keep, e * inv, 0.0)

    # Attention output (batched MXU matmul).
    o = jnp.einsum("hqk,hkd->hqd", p, v, preferred_element_type=jnp.float32)
    o_ref[...] = o.astype(o_ref.dtype)


def attention(query, key, value, attn_mask, seed=0):
    """query/key/value: (B, H, S, D) f32; attn_mask: (1, 1, S, S) f32."""
    B, H, S, D = query.shape
    BH = B * H
    q = query.reshape(BH, S, D)
    k = key.reshape(BH, S, D)
    v = value.reshape(BH, S, D)
    mask2d = attn_mask.reshape(S, S)

    kernel = functools.partial(_attn_kernel, seed=int(seed))

    flops = 4 * BH * S * S * D                                   # two matmuls
    bytes_accessed = 4 * (3 * BH * S * D + S * S + BH * S * D)   # f32 in + out

    # Single-step call: whole problem (<300 KB) lives in VMEM; no grid, so no
    # per-step pipeline overhead and all heads share one batched matmul.
    out = pl.pallas_call(
        kernel,
        out_shape=jax.ShapeDtypeStruct((BH, S, D), query.dtype),
        cost_estimate=pl.CostEstimate(
            flops=flops,
            transcendentals=BH * S * S,
            bytes_accessed=bytes_accessed,
        ),
    )(q, k, v, mask2d)

    return out.reshape(B, H, S, D)


if __name__ == "__main__":
    # Small shapes consistent with the module's forward:
    # B=1, heads=4, seq=64, head_dim=16, mask broadcastable over (B, H).
    B, H, S, D = 1, 4, 64, 16
    key0 = jax.random.PRNGKey(0)
    kq, kk, kv, km = jax.random.split(key0, 4)

    query = jax.random.normal(kq, (B, H, S, D), dtype=jnp.float32)
    key_t = jax.random.normal(kk, (B, H, S, D), dtype=jnp.float32)
    value = jax.random.normal(kv, (B, H, S, D), dtype=jnp.float32)
    attn_mask = jax.random.normal(km, (1, 1, S, S), dtype=jnp.float32)

    out = attention(query, key_t, value, attn_mask, seed=0)
    jax.block_until_ready(out)

    assert out.shape == (B, H, S, D)
    assert out.dtype == jnp.float32
    assert bool(jnp.all(jnp.isfinite(out)))
    print("KERNEL_OK")
</pallas_src>

<mosaic_0001>
module attributes {stable_mosaic.version = 11 : i64} {
  func.func @_attn_kernel(%arg0: memref<4x64x16xf32, #tpu.memory_space<vmem>>, %arg1: memref<4x64x16xf32, #tpu.memory_space<vmem>>, %arg2: memref<4x64x16xf32, #tpu.memory_space<vmem>>, %arg3: memref<64x64xf32, #tpu.memory_space<vmem>>, %arg4: memref<4x64x16xf32, #tpu.memory_space<vmem>>) attributes {dimension_semantics = [], scalar_prefetch = 0 : i64, scratch_operands = 0 : i64, tpu.core_type = #tpu.core_type<tc>} {
    %c0 = arith.constant 0 : index
    %c0_0 = arith.constant 0 : index
    %c0_1 = arith.constant 0 : index
    %0 = vector.load %arg0[%c0, %c0_0, %c0_1] : memref<4x64x16xf32, #tpu.memory_space<vmem>>, vector<4x64x16xf32>
    %cst = arith.constant 2.500000e-01 : f32
    %1 = vector.broadcast %cst : f32 to vector<4x64x16xf32>
    %2 = arith.mulf %0, %1 : vector<4x64x16xf32>
    %c0_2 = arith.constant 0 : index
    %c0_3 = arith.constant 0 : index
    %c0_4 = arith.constant 0 : index
    %3 = vector.load %arg1[%c0_2, %c0_3, %c0_4] : memref<4x64x16xf32, #tpu.memory_space<vmem>>, vector<4x64x16xf32>
    %c0_5 = arith.constant 0 : index
    %c0_6 = arith.constant 0 : index
    %c0_7 = arith.constant 0 : index
    %4 = vector.load %arg2[%c0_5, %c0_6, %c0_7] : memref<4x64x16xf32, #tpu.memory_space<vmem>>, vector<4x64x16xf32>
    %c0_8 = arith.constant 0 : index
    %c0_9 = arith.constant 0 : index
    %5 = vector.load %arg3[%c0_8, %c0_9] : memref<64x64xf32, #tpu.memory_space<vmem>>, vector<64x64xf32>
    "tpu.trace_start"() <{level = 10 : i32, message = "hqd,hkd->hqk"}> : () -> ()
    %cst_10 = arith.constant dense<0.000000e+00> : vector<4x64x64xf32>
    %6 = tpu.matmul %2, %3, %cst_10 {dimension_numbers = #tpu.dot_dimension_numbers<[2], [2], [1], [1], [0, 0, 0, 1, 1, 1], [0], [0]>} : vector<4x64x16xf32>, vector<4x64x16xf32>, vector<4x64x64xf32> -> vector<4x64x64xf32>
    "tpu.trace_stop"() : () -> ()
    %7 = vector.shape_cast %5 : vector<64x64xf32> to vector<1x64x64xf32>
    %8 = vector.broadcast %7 : vector<1x64x64xf32> to vector<4x64x64xf32>
    %9 = arith.addf %6, %8 : vector<4x64x64xf32>
    %cst_11 = arith.constant dense<0xFF800000> : vector<4x64xf32>
    %10 = vector.multi_reduction <maximumf>, %9, %cst_11 [2] : vector<4x64x64xf32> to vector<4x64xf32>
    %11 = vector.shape_cast %10 : vector<4x64xf32> to vector<4x64x1xf32>
    %12 = vector.broadcast %11 : vector<4x64x1xf32> to vector<4x64x64xf32>
    %13 = arith.subf %9, %12 : vector<4x64x64xf32>
    %14 = math.exp %13 : vector<4x64x64xf32>
    %cst_12 = arith.constant dense<0.000000e+00> : vector<4x64xf32>
    %15 = vector.multi_reduction <add>, %14, %cst_12 [2] : vector<4x64x64xf32> to vector<4x64xf32>
    %16 = vector.shape_cast %15 : vector<4x64xf32> to vector<4x64x1xf32>
    %cst_13 = arith.constant 0.899999976 : f32
    %17 = vector.broadcast %cst_13 : f32 to vector<4x64x1xf32>
    %18 = arith.mulf %16, %17 : vector<4x64x1xf32>
    %19 = tpu.reciprocal %18 {approx = true} : vector<4x64x1xf32> -> vector<4x64x1xf32>
    %20 = tpu.iota {dimensions = array<i32: 0>} : vector<4x64x64xi32>
    %21 = tpu.iota {dimensions = array<i32: 1>} : vector<4x64x64xi32>
    %22 = tpu.iota {dimensions = array<i32: 2>} : vector<4x64x64xi32>
    %c4096_i32 = arith.constant 4096 : i32
    %23 = vector.broadcast %c4096_i32 : i32 to vector<4x64x64xi32>
    %24 = arith.muli %20, %23 : vector<4x64x64xi32>
    %c64_i32 = arith.constant 64 : i32
    %25 = vector.broadcast %c64_i32 : i32 to vector<4x64x64xi32>
    %26 = arith.muli %21, %25 : vector<4x64x64xi32>
    %27 = arith.addi %24, %26 : vector<4x64x64xi32>
    %28 = arith.addi %27, %22 : vector<4x64x64xi32>
    %c0_i32 = arith.constant 0 : i32
    %29 = vector.broadcast %c0_i32 : i32 to vector<4x64x64xi32>
    %30 = arith.addi %28, %29 : vector<4x64x64xi32>
    %c16_i32 = arith.constant 16 : i32
    %31 = vector.broadcast %c16_i32 : i32 to vector<4x64x64xi32>
    %32 = arith.shrui %30, %31 : vector<4x64x64xi32>
    %33 = arith.xori %30, %32 : vector<4x64x64xi32>
    %c2146121005_i32 = arith.constant 2146121005 : i32
    %34 = vector.broadcast %c2146121005_i32 : i32 to vector<4x64x64xi32>
    %35 = arith.muli %33, %34 : vector<4x64x64xi32>
    %c15_i32 = arith.constant 15 : i32
    %36 = vector.broadcast %c15_i32 : i32 to vector<4x64x64xi32>
    %37 = arith.shrui %35, %36 : vector<4x64x64xi32>
    %38 = arith.xori %35, %37 : vector<4x64x64xi32>
    %c-2073254261_i32 = arith.constant -2073254261 : i32
    %39 = vector.broadcast %c-2073254261_i32 : i32 to vector<4x64x64xi32>
    %40 = arith.muli %38, %39 : vector<4x64x64xi32>
    %c16_i32_14 = arith.constant 16 : i32
    %41 = vector.broadcast %c16_i32_14 : i32 to vector<4x64x64xi32>
    %42 = arith.shrui %40, %41 : vector<4x64x64xi32>
    %43 = arith.xori %40, %42 : vector<4x64x64xi32>
    %c16777215_i32 = arith.constant 16777215 : i32
    %44 = vector.broadcast %c16777215_i32 : i32 to vector<4x64x64xi32>
    %45 = arith.andi %43, %44 : vector<4x64x64xi32>
    %c1677721_i32 = arith.constant 1677721 : i32
    %46 = vector.broadcast %c1677721_i32 : i32 to vector<4x64x64xi32>
    %47 = arith.cmpi uge, %45, %46 : vector<4x64x64xi32>
    %48 = vector.broadcast %19 : vector<4x64x1xf32> to vector<4x64x64xf32>
    %49 = arith.mulf %14, %48 : vector<4x64x64xf32>
    %cst_15 = arith.constant 0.000000e+00 : f32
    %50 = vector.broadcast %cst_15 : f32 to vector<4x64x64xf32>
    %51 = arith.select %47, %49, %50 : vector<4x64x64xi1>, vector<4x64x64xf32>
    "tpu.trace_start"() <{level = 10 : i32, message = "hqk,hkd->hqd"}> : () -> ()
    %cst_16 = arith.constant dense<0.000000e+00> : vector<4x64x16xf32>
    %52 = tpu.matmul %51, %4, %cst_16 {dimension_numbers = #tpu.dot_dimension_numbers<[2], [1], [1], [2], [0, 0, 0, 1, 1, 2], [0], [0]>} : vector<4x64x64xf32>, vector<4x64x16xf32>, vector<4x64x16xf32> -> vector<4x64x16xf32>
    "tpu.trace_stop"() : () -> ()
    %c0_17 = arith.constant 0 : index
    %c0_18 = arith.constant 0 : index
    %c0_19 = arith.constant 0 : index
    %53 = vector.load %arg4[%c0_17, %c0_18, %c0_19] : memref<4x64x16xf32, #tpu.memory_space<vmem>>, vector<4x64x16xf32>
    tpu.vector_store %arg4[%c0_17, %c0_18, %c0_19], %52 {strides = array<i32>} : memref<4x64x16xf32, #tpu.memory_space<vmem>>, vector<4x64x16xf32>,
    return
  }
}

</mosaic_0001>

<llo_original>
// kernel: tpu_custom_call.1
$region0: #{tpu_custom_call.1}
  #allocation0 [shape = 'u32[]', space=smem, size = 0x4, offset = 0x4, fixed_abs, tag = 'smem constant byte address 0x4 - core index']
  #allocation1 [shape = 'u32[144,128]{1,0:T(1,128)}', space=vmem, size = 0x12000, scoped, tag = 'internal scratch']
  %s0 = inlined_call_operand.vmem [shape: f32[4,64,16], index: 0, kind: input, shape index: {}]
  %s1 = inlined_call_operand.vmem [shape: f32[4,64,16], index: 1, kind: input, shape index: {}]
  %s2 = inlined_call_operand.vmem [shape: f32[4,64,16], index: 2, kind: input, shape index: {}]
  %s3 = inlined_call_operand.vmem [shape: f32[64,64], index: 3, kind: input, shape index: {}]
  %s4 = inlined_call_operand.vmem [shape: f32[4,64,16], index: 4, kind: output, shape index: {}]
  %s5 = sld [smem:[#allocation0]]
  $region26: #{tpu_custom_call.1} parent=0
    _
  %s7 = ssub.s32 1, %s5
  %s8 = scalar_select 0, %s7, %s5
  // Predicated region
  $region2: #{tpu_custom_call.1} parent=0 // pred_check
    _
  $region3: #{tpu_custom_call.1} parent=0 // pred_check_branch
    %10 = sbr.rel (0) target = $region5
  $region4: #{tpu_custom_call.1} parent=0 // pred_region
    _
  $region5: #{tpu_custom_call.1} parent=0 // pred_fallthru
    _
  // Predicated region
  $region6: #{tpu_custom_call.1} parent=0 // pred_check
    _
  $region7: #{tpu_custom_call.1} parent=0 // pred_check_branch
    %12 = sbr.rel (0) target = $region9
  $region8: #{tpu_custom_call.1} parent=0 // pred_region
    _
  $region9: #{tpu_custom_call.1} parent=0 // pred_fallthru
    _
  // Predicated region
  $region10: #{tpu_custom_call.1} parent=0 // pred_check
    _
  $region11: #{tpu_custom_call.1} parent=0 // pred_check_branch
    %14 = sbr.rel (0) target = $region13
  $region12: #{tpu_custom_call.1} parent=0 // pred_region
    _
  $region13: #{tpu_custom_call.1} parent=0 // pred_fallthru
    _
  // Predicated region
  $region14: #{tpu_custom_call.1} parent=0 // pred_check
    _
  $region15: #{tpu_custom_call.1} parent=0 // pred_check_branch
    %16 = sbr.rel (0) target = $region17
  $region16: #{tpu_custom_call.1} parent=0 // pred_region
    _
  $region17: #{tpu_custom_call.1} parent=0 // pred_fallthru
    _
  %v17 = vld [vmem:[%s0] sm:$0xff]
  %v18 = vld [vmem:[%s0 + $0x8] sm:$0xff]
  %v19 = vld [vmem:[%s0 + $0x10] sm:$0xff]
  %v20 = vld [vmem:[%s0 + $0x18] sm:$0xff]
  %v21 = vld [vmem:[%s0 + $0x20] sm:$0xff]
  %v22 = vld [vmem:[%s0 + $0x28] sm:$0xff]
  %v23 = vld [vmem:[%s0 + $0x30] sm:$0xff]
  %v24 = vld [vmem:[%s0 + $0x38] sm:$0xff]
  %v25 = vld [vmem:[%s0 + $0x40] sm:$0xff]
  %v26 = vld [vmem:[%s0 + $0x48] sm:$0xff]
  %v27 = vld [vmem:[%s0 + $0x50] sm:$0xff]
  %v28 = vld [vmem:[%s0 + $0x58] sm:$0xff]
  %v29 = vld [vmem:[%s0 + $0x60] sm:$0xff]
  %v30 = vld [vmem:[%s0 + $0x68] sm:$0xff]
  %v31 = vld [vmem:[%s0 + $0x70] sm:$0xff]
  %v32 = vld [vmem:[%s0 + $0x78] sm:$0xff]
  %v33 = vld [vmem:[%s0 + $0x80] sm:$0xff]
  %v34 = vld [vmem:[%s0 + $0x88] sm:$0xff]
  %v35 = vld [vmem:[%s0 + $0x90] sm:$0xff]
  %v36 = vld [vmem:[%s0 + $0x98] sm:$0xff]
  %v37 = vld [vmem:[%s0 + $0xa0] sm:$0xff]
  %v38 = vld [vmem:[%s0 + $0xa8] sm:$0xff]
  %v39 = vld [vmem:[%s0 + $0xb0] sm:$0xff]
  %v40 = vld [vmem:[%s0 + $0xb8] sm:$0xff]
  %v41 = vld [vmem:[%s0 + $0xc0] sm:$0xff]
  %v42 = vld [vmem:[%s0 + $0xc8] sm:$0xff]
  %v43 = vld [vmem:[%s0 + $0xd0] sm:$0xff]
  %v44 = vld [vmem:[%s0 + $0xd8] sm:$0xff]
  %v45 = vld [vmem:[%s0 + $0xe0] sm:$0xff]
  %v46 = vld [vmem:[%s0 + $0xe8] sm:$0xff]
  %v47 = vld [vmem:[%s0 + $0xf0] sm:$0xff]
  %v48 = vld [vmem:[%s0 + $0xf8] sm:$0xff]
  %v49 = vmul.f32 %v17, 0.25
  %v50 = vmul.f32 %v18, 0.25
  %v51 = vmul.f32 %v19, 0.25
  %v52 = vmul.f32 %v20, 0.25
  %v53 = vmul.f32 %v21, 0.25
  %v54 = vmul.f32 %v22, 0.25
  %v55 = vmul.f32 %v23, 0.25
  %v56 = vmul.f32 %v24, 0.25
  %v57 = vmul.f32 %v25, 0.25
  %v58 = vmul.f32 %v26, 0.25
  %v59 = vmul.f32 %v27, 0.25
  %v60 = vmul.f32 %v28, 0.25
  %v61 = vmul.f32 %v29, 0.25
  %v62 = vmul.f32 %v30, 0.25
  %v63 = vmul.f32 %v31, 0.25
  %v64 = vmul.f32 %v32, 0.25
  %v65 = vmul.f32 %v33, 0.25
  %v66 = vmul.f32 %v34, 0.25
  %v67 = vmul.f32 %v35, 0.25
  %v68 = vmul.f32 %v36, 0.25
  %v69 = vmul.f32 %v37, 0.25
  %v70 = vmul.f32 %v38, 0.25
  %v71 = vmul.f32 %v39, 0.25
  %v72 = vmul.f32 %v40, 0.25
  %v73 = vmul.f32 %v41, 0.25
  %v74 = vmul.f32 %v42, 0.25
  %v75 = vmul.f32 %v43, 0.25
  %v76 = vmul.f32 %v44, 0.25
  %v77 = vmul.f32 %v45, 0.25
  %v78 = vmul.f32 %v46, 0.25
  %v79 = vmul.f32 %v47, 0.25
  %v80 = vmul.f32 %v48, 0.25
  %v81 = vld [vmem:[%s1] sm:$0xff]
  %v82 = vld [vmem:[%s1 + $0x8] sm:$0xff]
  %v83 = vld [vmem:[%s1 + $0x10] sm:$0xff]
  %v84 = vld [vmem:[%s1 + $0x18] sm:$0xff]
  %v85 = vld [vmem:[%s1 + $0x20] sm:$0xff]
  %v86 = vld [vmem:[%s1 + $0x28] sm:$0xff]
  %v87 = vld [vmem:[%s1 + $0x30] sm:$0xff]
  %v88 = vld [vmem:[%s1 + $0x38] sm:$0xff]
  %v89 = vld [vmem:[%s1 + $0x40] sm:$0xff]
  %v90 = vld [vmem:[%s1 + $0x48] sm:$0xff]
  %v91 = vld [vmem:[%s1 + $0x50] sm:$0xff]
  %v92 = vld [vmem:[%s1 + $0x58] sm:$0xff]
  %v93 = vld [vmem:[%s1 + $0x60] sm:$0xff]
  %v94 = vld [vmem:[%s1 + $0x68] sm:$0xff]
  %v95 = vld [vmem:[%s1 + $0x70] sm:$0xff]
  %v96 = vld [vmem:[%s1 + $0x78] sm:$0xff]
  %v97 = vld [vmem:[%s1 + $0x80] sm:$0xff]
  %v98 = vld [vmem:[%s1 + $0x88] sm:$0xff]
  %v99 = vld [vmem:[%s1 + $0x90] sm:$0xff]
  %v100 = vld [vmem:[%s1 + $0x98] sm:$0xff]
  %v101 = vld [vmem:[%s1 + $0xa0] sm:$0xff]
  %v102 = vld [vmem:[%s1 + $0xa8] sm:$0xff]
  %v103 = vld [vmem:[%s1 + $0xb0] sm:$0xff]
  %v104 = vld [vmem:[%s1 + $0xb8] sm:$0xff]
  %v105 = vld [vmem:[%s1 + $0xc0] sm:$0xff]
  %v106 = vld [vmem:[%s1 + $0xc8] sm:$0xff]
  %v107 = vld [vmem:[%s1 + $0xd0] sm:$0xff]
  %v108 = vld [vmem:[%s1 + $0xd8] sm:$0xff]
  %v109 = vld [vmem:[%s1 + $0xe0] sm:$0xff]
  %v110 = vld [vmem:[%s1 + $0xe8] sm:$0xff]
  %v111 = vld [vmem:[%s1 + $0xf0] sm:$0xff]
  %v112 = vld [vmem:[%s1 + $0xf8] sm:$0xff]
  %v113 = vld [vmem:[%s2] sm:$0xff]
  %v114 = vld [vmem:[%s2 + $0x8] sm:$0xff]
  %v115 = vld [vmem:[%s2 + $0x10] sm:$0xff]
  %v116 = vld [vmem:[%s2 + $0x18] sm:$0xff]
  %v117 = vld [vmem:[%s2 + $0x20] sm:$0xff]
  %v118 = vld [vmem:[%s2 + $0x28] sm:$0xff]
  %v119 = vld [vmem:[%s2 + $0x30] sm:$0xff]
  %v120 = vld [vmem:[%s2 + $0x38] sm:$0xff]
  %v121 = vld [vmem:[%s2 + $0x40] sm:$0xff]
  %v122 = vld [vmem:[%s2 + $0x48] sm:$0xff]
  %v123 = vld [vmem:[%s2 + $0x50] sm:$0xff]
  %v124 = vld [vmem:[%s2 + $0x58] sm:$0xff]
  %v125 = vld [vmem:[%s2 + $0x60] sm:$0xff]
  %v126 = vld [vmem:[%s2 + $0x68] sm:$0xff]
  %v127 = vld [vmem:[%s2 + $0x70] sm:$0xff]
  %v128 = vld [vmem:[%s2 + $0x78] sm:$0xff]
  %v129 = vld [vmem:[%s2 + $0x80] sm:$0xff]
  %v130 = vld [vmem:[%s2 + $0x88] sm:$0xff]
  %v131 = vld [vmem:[%s2 + $0x90] sm:$0xff]
  %v132 = vld [vmem:[%s2 + $0x98] sm:$0xff]
  %v133 = vld [vmem:[%s2 + $0xa0] sm:$0xff]
  %v134 = vld [vmem:[%s2 + $0xa8] sm:$0xff]
  %v135 = vld [vmem:[%s2 + $0xb0] sm:$0xff]
  %v136 = vld [vmem:[%s2 + $0xb8] sm:$0xff]
  %v137 = vld [vmem:[%s2 + $0xc0] sm:$0xff]
  %v138 = vld [vmem:[%s2 + $0xc8] sm:$0xff]
  %v139 = vld [vmem:[%s2 + $0xd0] sm:$0xff]
  %v140 = vld [vmem:[%s2 + $0xd8] sm:$0xff]
  %v141 = vld [vmem:[%s2 + $0xe0] sm:$0xff]
  %v142 = vld [vmem:[%s2 + $0xe8] sm:$0xff]
  %v143 = vld [vmem:[%s2 + $0xf0] sm:$0xff]
  %v144 = vld [vmem:[%s2 + $0xf8] sm:$0xff]
  %v145 = vld [vmem:[%s3] sm:$0xff]
  %v146 = vld [vmem:[%s3 + $0x8] sm:$0xff]
  %v147 = vld [vmem:[%s3 + $0x10] sm:$0xff]
  %v148 = vld [vmem:[%s3 + $0x18] sm:$0xff]
  %v149 = vld [vmem:[%s3 + $0x20] sm:$0xff]
  %v150 = vld [vmem:[%s3 + $0x28] sm:$0xff]
  %v151 = vld [vmem:[%s3 + $0x30] sm:$0xff]
  %v152 = vld [vmem:[%s3 + $0x38] sm:$0xff]
  %vm153 = vcmask 130048
  %v155 = vsel %vm153, %v49, 0
  %v158 = vsel %vm153, %v50, 0
  %v161 = vsel %vm153, %v51, 0
  %v164 = vsel %vm153, %v52, 0
  %v167 = vsel %vm153, %v53, 0
  %v170 = vsel %vm153, %v54, 0
  %v173 = vsel %vm153, %v55, 0
  %v176 = vsel %vm153, %v56, 0
  %v179 = vsel %vm153, %v81, 0
  %v182 = vsel %vm153, %v82, 0
  %v185 = vsel %vm153, %v83, 0
  %v188 = vsel %vm153, %v84, 0
  %v191 = vsel %vm153, %v85, 0
  %v194 = vsel %vm153, %v86, 0
  %v197 = vsel %vm153, %v87, 0
  %v200 = vsel %vm153, %v88, 0
  %202 = vmatprep.subr.mxu0 0.0
  %203 = vmatpush1.xpose.msra.mxu0 0.0
  %204 = vmatprep.subr.mxu0 0.0
  %205 = vmatpush1.xpose.msra.mxu0 0.0
  %206 = vmatprep.subr.mxu0 0.0
  %207 = vmatpush1.xpose.msra.mxu0 0.0
  %208 = vmatprep.subr.mxu0 0.0
  %209 = vmatpush1.xpose.msra.mxu0 0.0
  %210 = vmatprep.subr.mxu0 0.0
  %211 = vmatpush1.xpose.msra.mxu0 0.0
  %212 = vmatprep.subr.mxu0 0.0
  %213 = vmatpush1.xpose.msra.mxu0 0.0
  %214 = vmatprep.subr.mxu0 0.0
  %215 = vmatpush1.xpose.msra.mxu0 0.0
  %216 = vmatprep.subr.mxu0 0.0
  %217 = vmatpush1.xpose.msra.mxu0 0.0
  %218 = vmatprep.subr.mxu0 0.0
  %219 = vmatpush1.xpose.msra.mxu0 %v200
  %220 = vmatprep.subr.mxu0 0.0
  %221 = vmatpush1.xpose.msra.mxu0 %v197
  %222 = vmatprep.subr.mxu0 0.0
  %223 = vmatpush1.xpose.msra.mxu0 %v194
  %224 = vmatprep.subr.mxu0 0.0
  %225 = vmatpush1.xpose.msra.mxu0 %v191
  %226 = vmatprep.subr.mxu0 0.0
  %227 = vmatpush1.xpose.msra.mxu0 %v188
  %228 = vmatprep.subr.mxu0 0.0
  %229 = vmatpush1.xpose.msra.mxu0 %v185
  %230 = vmatprep.subr.mxu0 0.0
  %231 = vmatpush1.xpose.msra.mxu0 %v182
  %232 = vmatprep.subr.mxu0 0.0
  %233 = vmatpush1.xpose.msra.mxu0 %v179
  %234 = vmatprep.subr.mxu0 0.0
  %235 = vmatpush2.xpose.msra.mxu0 0.0
  %236 = vmatprep.subr.mxu0 0.0
  %237 = vmatpush2.xpose.msra.mxu0 0.0
  %238 = vmatprep.subr.mxu0 0.0
  %239 = vmatpush2.xpose.msra.mxu0 0.0
  %240 = vmatprep.subr.mxu0 0.0
  %241 = vmatpush2.xpose.msra.mxu0 0.0
  %242 = vmatprep.subr.mxu0 0.0
  %243 = vmatpush2.xpose.msra.mxu0 0.0
  %244 = vmatprep.subr.mxu0 0.0
  %245 = vmatpush2.xpose.msra.mxu0 0.0
  %246 = vmatprep.subr.mxu0 0.0
  %247 = vmatpush2.xpose.msra.mxu0 0.0
  %248 = vmatprep.subr.mxu0 0.0
  %249 = vmatpush2.xpose.msra.mxu0 0.0
  %250 = vmatprep.subr.mxu0 0.0
  %251 = vmatpush2.xpose.msra.mxu0 0.0
  %252 = vmatprep.subr.mxu0 0.0
  %253 = vmatpush2.xpose.msra.mxu0 0.0
  %254 = vmatprep.subr.mxu0 0.0
  %255 = vmatpush2.xpose.msra.mxu0 0.0
  %256 = vmatprep.subr.mxu0 0.0
  %257 = vmatpush2.xpose.msra.mxu0 0.0
  %258 = vmatprep.subr.mxu0 0.0
  %259 = vmatpush2.xpose.msra.mxu0 0.0
  %260 = vmatprep.subr.mxu0 0.0
  %261 = vmatpush2.xpose.msra.mxu0 0.0
  %262 = vmatprep.subr.mxu0 0.0
  %263 = vmatpush2.xpose.msra.mxu0 0.0
  %264 = vmatprep.subr.mxu0 0.0
  %265 = vmatpush2.xpose.msra.mxu0 0.0
  %266 = vmatprep.mubr.f32.mxu0 0.0
  %267 = vmatmul.mubr.f32.gmra.mxu0 %v155
  %v268 = vpop.f32.mrf.mxu0
  %v269 = vadd.f32 %v145, %v268
  %v270 = vpop.f32.mrf.mxu0
  %271 = vmatprep.mubr.f32.mxu0 0.0
  %272 = vmatmul.mubr.f32.gmra.mxu0 %v158
  %v273 = vpop.f32.mrf.mxu0
  %v274 = vadd.f32 %v146, %v273
  %v275 = vpop.f32.mrf.mxu0
  %276 = vmatprep.mubr.f32.mxu0 0.0
  %277 = vmatmul.mubr.f32.gmra.mxu0 %v161
  %v278 = vpop.f32.mrf.mxu0
  %v279 = vadd.f32 %v147, %v278
  %v280 = vpop.f32.mrf.mxu0
  %281 = vmatprep.mubr.f32.mxu0 0.0
  %282 = vmatmul.mubr.f32.gmra.mxu0 %v164
  %v283 = vpop.f32.mrf.mxu0
  %v284 = vadd.f32 %v148, %v283
  %v285 = vpop.f32.mrf.mxu0
  %286 = vmatprep.mubr.f32.mxu0 0.0
  %287 = vmatmul.mubr.f32.gmra.mxu0 %v167
  %v288 = vpop.f32.mrf.mxu0
  %v289 = vadd.f32 %v149, %v288
  %v290 = vpop.f32.mrf.mxu0
  %291 = vmatprep.mubr.f32.mxu0 0.0
  %292 = vmatmul.mubr.f32.gmra.mxu0 %v170
  %v293 = vpop.f32.mrf.mxu0
  %v294 = vadd.f32 %v150, %v293
  %v295 = vpop.f32.mrf.mxu0
  %296 = vmatprep.mubr.f32.mxu0 0.0
  %297 = vmatmul.mubr.f32.gmra.mxu0 %v173
  %v298 = vpop.f32.mrf.mxu0
  %v299 = vadd.f32 %v151, %v298
  %v300 = vpop.f32.mrf.mxu0
  %301 = vmatprep.mubr.f32.mxu0 0.0
  %302 = vmatmul.mubr.f32.gmra.mxu0 %v176
  %v303 = vpop.f32.mrf.mxu0
  %v304 = vadd.f32 %v152, %v303
  %v305 = vpop.f32.mrf.mxu0
  %306 = vdwg.mxu0
  %v308 = vsel %vm153, %v57, 0
  %v311 = vsel %vm153, %v58, 0
  %v314 = vsel %vm153, %v59, 0
  %v317 = vsel %vm153, %v60, 0
  %v320 = vsel %vm153, %v61, 0
  %v323 = vsel %vm153, %v62, 0
  %v326 = vsel %vm153, %v63, 0
  %v329 = vsel %vm153, %v64, 0
  %v332 = vsel %vm153, %v89, 0
  %v335 = vsel %vm153, %v90, 0
  %v338 = vsel %vm153, %v91, 0
  %v341 = vsel %vm153, %v92, 0
  %v344 = vsel %vm153, %v93, 0
  %v347 = vsel %vm153, %v94, 0
  %v350 = vsel %vm153, %v95, 0
  %v353 = vsel %vm153, %v96, 0
  %355 = vmatprep.subr.mxu0 0.0
  %356 = vmatpush1.xpose.msra.mxu0 0.0
  %357 = vmatprep.subr.mxu0 0.0
  %358 = vmatpush1.xpose.msra.mxu0 0.0
  %359 = vmatprep.subr.mxu0 0.0
  %360 = vmatpush1.xpose.msra.mxu0 0.0
  %361 = vmatprep.subr.mxu0 0.0
  %362 = vmatpush1.xpose.msra.mxu0 0.0
  %363 = vmatprep.subr.mxu0 0.0
  %364 = vmatpush1.xpose.msra.mxu0 0.0
  %365 = vmatprep.subr.mxu0 0.0
  %366 = vmatpush1.xpose.msra.mxu0 0.0
  %367 = vmatprep.subr.mxu0 0.0
  %368 = vmatpush1.xpose.msra.mxu0 0.0
  %369 = vmatprep.subr.mxu0 0.0
  %370 = vmatpush1.xpose.msra.mxu0 0.0
  %371 = vmatprep.subr.mxu0 0.0
  %372 = vmatpush1.xpose.msra.mxu0 %v353
  %373 = vmatprep.subr.mxu0 0.0
  %374 = vmatpush1.xpose.msra.mxu0 %v350
  %375 = vmatprep.subr.mxu0 0.0
  %376 = vmatpush1.xpose.msra.mxu0 %v347
  %377 = vmatprep.subr.mxu0 0.0
  %378 = vmatpush1.xpose.msra.mxu0 %v344
  %379 = vmatprep.subr.mxu0 0.0
  %380 = vmatpush1.xpose.msra.mxu0 %v341
  %381 = vmatprep.subr.mxu0 0.0
  %382 = vmatpush1.xpose.msra.mxu0 %v338
  %383 = vmatprep.subr.mxu0 0.0
  %384 = vmatpush1.xpose.msra.mxu0 %v335
  %385 = vmatprep.subr.mxu0 0.0
  %386 = vmatpush1.xpose.msra.mxu0 %v332
  %387 = vmatprep.subr.mxu0 0.0
  %388 = vmatpush2.xpose.msra.mxu0 0.0
  %389 = vmatprep.subr.mxu0 0.0
  %390 = vmatpush2.xpose.msra.mxu0 0.0
  %391 = vmatprep.subr.mxu0 0.0
  %392 = vmatpush2.xpose.msra.mxu0 0.0
  %393 = vmatprep.subr.mxu0 0.0
  %394 = vmatpush2.xpose.msra.mxu0 0.0
  %395 = vmatprep.subr.mxu0 0.0
  %396 = vmatpush2.xpose.msra.mxu0 0.0
  %397 = vmatprep.subr.mxu0 0.0
  %398 = vmatpush2.xpose.msra.mxu0 0.0
  %399 = vmatprep.subr.mxu0 0.0
  %400 = vmatpush2.xpose.msra.mxu0 0.0
  %401 = vmatprep.subr.mxu0 0.0
  %402 = vmatpush2.xpose.msra.mxu0 0.0
  %403 = vmatprep.subr.mxu0 0.0
  %404 = vmatpush2.xpose.msra.mxu0 0.0
  %405 = vmatprep.subr.mxu0 0.0
  %406 = vmatpush2.xpose.msra.mxu0 0.0
  %407 = vmatprep.subr.mxu0 0.0
  %408 = vmatpush2.xpose.msra.mxu0 0.0
  %409 = vmatprep.subr.mxu0 0.0
  %410 = vmatpush2.xpose.msra.mxu0 0.0
  %411 = vmatprep.subr.mxu0 0.0
  %412 = vmatpush2.xpose.msra.mxu0 0.0
  %413 = vmatprep.subr.mxu0 0.0
  %414 = vmatpush2.xpose.msra.mxu0 0.0
  %415 = vmatprep.subr.mxu0 0.0
  %416 = vmatpush2.xpose.msra.mxu0 0.0
  %417 = vmatprep.subr.mxu0 0.0
  %418 = vmatpush2.xpose.msra.mxu0 0.0
  %419 = vmatprep.mubr.f32.mxu0 0.0
  %420 = vmatmul.mubr.f32.gmra.mxu0 %v308
  %v421 = vpop.f32.mrf.mxu0
  %v422 = vadd.f32 %v145, %v421
  %v423 = vpop.f32.mrf.mxu0
  %424 = vmatprep.mubr.f32.mxu0 0.0
  %425 = vmatmul.mubr.f32.gmra.mxu0 %v311
  %v426 = vpop.f32.mrf.mxu0
  %v427 = vadd.f32 %v146, %v426
  %v428 = vpop.f32.mrf.mxu0
  %429 = vmatprep.mubr.f32.mxu0 0.0
  %430 = vmatmul.mubr.f32.gmra.mxu0 %v314
  %v431 = vpop.f32.mrf.mxu0
  %v432 = vadd.f32 %v147, %v431
  %v433 = vpop.f32.mrf.mxu0
  %434 = vmatprep.mubr.f32.mxu0 0.0
  %435 = vmatmul.mubr.f32.gmra.mxu0 %v317
  %v436 = vpop.f32.mrf.mxu0
  %v437 = vadd.f32 %v148, %v436
  %v438 = vpop.f32.mrf.mxu0
  %439 = vmatprep.mubr.f32.mxu0 0.0
  %440 = vmatmul.mubr.f32.gmra.mxu0 %v320
  %v441 = vpop.f32.mrf.mxu0
  %v442 = vadd.f32 %v149, %v441
  %v443 = vpop.f32.mrf.mxu0
  %444 = vmatprep.mubr.f32.mxu0 0.0
  %445 = vmatmul.mubr.f32.gmra.mxu0 %v323
  %v446 = vpop.f32.mrf.mxu0
  %v447 = vadd.f32 %v150, %v446
  %v448 = vpop.f32.mrf.mxu0
  %449 = vmatprep.mubr.f32.mxu0 0.0
  %450 = vmatmul.mubr.f32.gmra.mxu0 %v326
  %v451 = vpop.f32.mrf.mxu0
  %v452 = vadd.f32 %v151, %v451
  %v453 = vpop.f32.mrf.mxu0
  %454 = vmatprep.mubr.f32.mxu0 0.0
  %455 = vmatmul.mubr.f32.gmra.mxu0 %v329
  %v456 = vpop.f32.mrf.mxu0
  %v457 = vadd.f32 %v152, %v456
  %v458 = vpop.f32.mrf.mxu0
  %459 = vdwg.mxu0
  %v461 = vsel %vm153, %v65, 0
  %v464 = vsel %vm153, %v66, 0
  %v467 = vsel %vm153, %v67, 0
  %v470 = vsel %vm153, %v68, 0
  %v473 = vsel %vm153, %v69, 0
  %v476 = vsel %vm153, %v70, 0
  %v479 = vsel %vm153, %v71, 0
  %v482 = vsel %vm153, %v72, 0
  %v485 = vsel %vm153, %v97, 0
  %v488 = vsel %vm153, %v98, 0
  %v491 = vsel %vm153, %v99, 0
  %v494 = vsel %vm153, %v100, 0
  %v497 = vsel %vm153, %v101, 0
  %v500 = vsel %vm153, %v102, 0
  %v503 = vsel %vm153, %v103, 0
  %v506 = vsel %vm153, %v104, 0
  %508 = vmatprep.subr.mxu0 0.0
  %509 = vmatpush1.xpose.msra.mxu0 0.0
  %510 = vmatprep.subr.mxu0 0.0
  %511 = vmatpush1.xpose.msra.mxu0 0.0
  %512 = vmatprep.subr.mxu0 0.0
  %513 = vmatpush1.xpose.msra.mxu0 0.0
  %514 = vmatprep.subr.mxu0 0.0
  %515 = vmatpush1.xpose.msra.mxu0 0.0
  %516 = vmatprep.subr.mxu0 0.0
  %517 = vmatpush1.xpose.msra.mxu0 0.0
  %518 = vmatprep.subr.mxu0 0.0
  %519 = vmatpush1.xpose.msra.mxu0 0.0
  %520 = vmatprep.subr.mxu0 0.0
  %521 = vmatpush1.xpose.msra.mxu0 0.0
  %522 = vmatprep.subr.mxu0 0.0
  %523 = vmatpush1.xpose.msra.mxu0 0.0
  %524 = vmatprep.subr.mxu0 0.0
  %525 = vmatpush1.xpose.msra.mxu0 %v506
  %526 = vmatprep.subr.mxu0 0.0
  %527 = vmatpush1.xpose.msra.mxu0 %v503
  %528 = vmatprep.subr.mxu0 0.0
  %529 = vmatpush1.xpose.msra.mxu0 %v500
  %530 = vmatprep.subr.mxu0 0.0
  %531 = vmatpush1.xpose.msra.mxu0 %v497
  %532 = vmatprep.subr.mxu0 0.0
  %533 = vmatpush1.xpose.msra.mxu0 %v494
  %534 = vmatprep.subr.mxu0 0.0
  %535 = vmatpush1.xpose.msra.mxu0 %v491
  %536 = vmatprep.subr.mxu0 0.0
  %537 = vmatpush1.xpose.msra.mxu0 %v488
  %538 = vmatprep.subr.mxu0 0.0
  %539 = vmatpush1.xpose.msra.mxu0 %v485
  %540 = vmatprep.subr.mxu0 0.0
  %541 = vmatpush2.xpose.msra.mxu0 0.0
  %542 = vmatprep.subr.mxu0 0.0
  %543 = vmatpush2.xpose.msra.mxu0 0.0
  %544 = vmatprep.subr.mxu0 0.0
  %545 = vmatpush2.xpose.msra.mxu0 0.0
  %546 = vmatprep.subr.mxu0 0.0
  %547 = vmatpush2.xpose.msra.mxu0 0.0
  %548 = vmatprep.subr.mxu0 0.0
  %549 = vmatpush2.xpose.msra.mxu0 0.0
  %550 = vmatprep.subr.mxu0 0.0
  %551 = vmatpush2.xpose.msra.mxu0 0.0
  %552 = vmatprep.subr.mxu0 0.0
  %553 = vmatpush2.xpose.msra.mxu0 0.0
  %554 = vmatprep.subr.mxu0 0.0
  %555 = vmatpush2.xpose.msra.mxu0 0.0
  %556 = vmatprep.subr.mxu0 0.0
  %557 = vmatpush2.xpose.msra.mxu0 0.0
  %558 = vmatprep.subr.mxu0 0.0
  %559 = vmatpush2.xpose.msra.mxu0 0.0
  %560 = vmatprep.subr.mxu0 0.0
  %561 = vmatpush2.xpose.msra.mxu0 0.0
  %562 = vmatprep.subr.mxu0 0.0
  %563 = vmatpush2.xpose.msra.mxu0 0.0
  %564 = vmatprep.subr.mxu0 0.0
  %565 = vmatpush2.xpose.msra.mxu0 0.0
  %566 = vmatprep.subr.mxu0 0.0
  %567 = vmatpush2.xpose.msra.mxu0 0.0
  %568 = vmatprep.subr.mxu0 0.0
  %569 = vmatpush2.xpose.msra.mxu0 0.0
  %570 = vmatprep.subr.mxu0 0.0
  %571 = vmatpush2.xpose.msra.mxu0 0.0
  %572 = vmatprep.mubr.f32.mxu0 0.0
  %573 = vmatmul.mubr.f32.gmra.mxu0 %v461
  %v574 = vpop.f32.mrf.mxu0
  %v575 = vadd.f32 %v145, %v574
  %v576 = vpop.f32.mrf.mxu0
  %577 = vmatprep.mubr.f32.mxu0 0.0
  %578 = vmatmul.mubr.f32.gmra.mxu0 %v464
  %v579 = vpop.f32.mrf.mxu0
  %v580 = vadd.f32 %v146, %v579
  %v581 = vpop.f32.mrf.mxu0
  %582 = vmatprep.mubr.f32.mxu0 0.0
  %583 = vmatmul.mubr.f32.gmra.mxu0 %v467
  %v584 = vpop.f32.mrf.mxu0
  %v585 = vadd.f32 %v147, %v584
  %v586 = vpop.f32.mrf.mxu0
  %587 = vmatprep.mubr.f32.mxu0 0.0
  %588 = vmatmul.mubr.f32.gmra.mxu0 %v470
  %v589 = vpop.f32.mrf.mxu0
  %v590 = vadd.f32 %v148, %v589
  %v591 = vpop.f32.mrf.mxu0
  %592 = vmatprep.mubr.f32.mxu0 0.0
  %593 = vmatmul.mubr.f32.gmra.mxu0 %v473
  %v594 = vpop.f32.mrf.mxu0
  %v595 = vadd.f32 %v149, %v594
  %v596 = vpop.f32.mrf.mxu0
  %597 = vmatprep.mubr.f32.mxu0 0.0
  %598 = vmatmul.mubr.f32.gmra.mxu0 %v476
  %v599 = vpop.f32.mrf.mxu0
  %v600 = vadd.f32 %v150, %v599
  %v601 = vpop.f32.mrf.mxu0
  %602 = vmatprep.mubr.f32.mxu0 0.0
  %603 = vmatmul.mubr.f32.gmra.mxu0 %v479
  %v604 = vpop.f32.mrf.mxu0
  %v605 = vadd.f32 %v151, %v604
  %v606 = vpop.f32.mrf.mxu0
  %607 = vmatprep.mubr.f32.mxu0 0.0
  %608 = vmatmul.mubr.f32.gmra.mxu0 %v482
  %v609 = vpop.f32.mrf.mxu0
  %v610 = vadd.f32 %v152, %v609
  %v611 = vpop.f32.mrf.mxu0
  %612 = vdwg.mxu0
  %v614 = vsel %vm153, %v73, 0
  %v617 = vsel %vm153, %v74, 0
  %v620 = vsel %vm153, %v75, 0
  %v623 = vsel %vm153, %v76, 0
  %v626 = vsel %vm153, %v77, 0
  %v629 = vsel %vm153, %v78, 0
  %v632 = vsel %vm153, %v79, 0
  %v635 = vsel %vm153, %v80, 0
  %v638 = vsel %vm153, %v105, 0
  %v641 = vsel %vm153, %v106, 0
  %v644 = vsel %vm153, %v107, 0
  %v647 = vsel %vm153, %v108, 0
  %v650 = vsel %vm153, %v109, 0
  %v653 = vsel %vm153, %v110, 0
  %v656 = vsel %vm153, %v111, 0
  %v659 = vsel %vm153, %v112, 0
  %661 = vmatprep.subr.mxu0 0.0
  %662 = vmatpush1.xpose.msra.mxu0 0.0
  %663 = vmatprep.subr.mxu0 0.0
  %664 = vmatpush1.xpose.msra.mxu0 0.0
  %665 = vmatprep.subr.mxu0 0.0
  %666 = vmatpush1.xpose.msra.mxu0 0.0
  %667 = vmatprep.subr.mxu0 0.0
  %668 = vmatpush1.xpose.msra.mxu0 0.0
  %669 = vmatprep.subr.mxu0 0.0
  %670 = vmatpush1.xpose.msra.mxu0 0.0
  %671 = vmatprep.subr.mxu0 0.0
  %672 = vmatpush1.xpose.msra.mxu0 0.0
  %673 = vmatprep.subr.mxu0 0.0
  %674 = vmatpush1.xpose.msra.mxu0 0.0
  %675 = vmatprep.subr.mxu0 0.0
  %676 = vmatpush1.xpose.msra.mxu0 0.0
  %677 = vmatprep.subr.mxu0 0.0
  %678 = vmatpush1.xpose.msra.mxu0 %v659
  %679 = vmatprep.subr.mxu0 0.0
  %680 = vmatpush1.xpose.msra.mxu0 %v656
  %681 = vmatprep.subr.mxu0 0.0
  %682 = vmatpush1.xpose.msra.mxu0 %v653
  %683 = vmatprep.subr.mxu0 0.0
  %684 = vmatpush1.xpose.msra.mxu0 %v650
  %685 = vmatprep.subr.mxu0 0.0
  %686 = vmatpush1.xpose.msra.mxu0 %v647
  %687 = vmatprep.subr.mxu0 0.0
  %688 = vmatpush1.xpose.msra.mxu0 %v644
  %689 = vmatprep.subr.mxu0 0.0
  %690 = vmatpush1.xpose.msra.mxu0 %v641
  %691 = vmatprep.subr.mxu0 0.0
  %692 = vmatpush1.xpose.msra.mxu0 %v638
  %693 = vmatprep.subr.mxu0 0.0
  %694 = vmatpush2.xpose.msra.mxu0 0.0
  %695 = vmatprep.subr.mxu0 0.0
  %696 = vmatpush2.xpose.msra.mxu0 0.0
  %697 = vmatprep.subr.mxu0 0.0
  %698 = vmatpush2.xpose.msra.mxu0 0.0
  %699 = vmatprep.subr.mxu0 0.0
  %700 = vmatpush2.xpose.msra.mxu0 0.0
  %701 = vmatprep.subr.mxu0 0.0
  %702 = vmatpush2.xpose.msra.mxu0 0.0
  %703 = vmatprep.subr.mxu0 0.0
  %704 = vmatpush2.xpose.msra.mxu0 0.0
  %705 = vmatprep.subr.mxu0 0.0
  %706 = vmatpush2.xpose.msra.mxu0 0.0
  %707 = vmatprep.subr.mxu0 0.0
  %708 = vmatpush2.xpose.msra.mxu0 0.0
  %709 = vmatprep.subr.mxu0 0.0
  %710 = vmatpush2.xpose.msra.mxu0 0.0
  %711 = vmatprep.subr.mxu0 0.0
  %712 = vmatpush2.xpose.msra.mxu0 0.0
  %713 = vmatprep.subr.mxu0 0.0
  %714 = vmatpush2.xpose.msra.mxu0 0.0
  %715 = vmatprep.subr.mxu0 0.0
  %716 = vmatpush2.xpose.msra.mxu0 0.0
  %717 = vmatprep.subr.mxu0 0.0
  %718 = vmatpush2.xpose.msra.mxu0 0.0
  %719 = vmatprep.subr.mxu0 0.0
  %720 = vmatpush2.xpose.msra.mxu0 0.0
  %721 = vmatprep.subr.mxu0 0.0
  %722 = vmatpush2.xpose.msra.mxu0 0.0
  %723 = vmatprep.subr.mxu0 0.0
  %724 = vmatpush2.xpose.msra.mxu0 0.0
  %725 = vmatprep.mubr.f32.mxu0 0.0
  %726 = vmatmul.mubr.f32.gmra.mxu0 %v614
  %v727 = vpop.f32.mrf.mxu0
  %v728 = vadd.f32 %v145, %v727
  %v729 = vpop.f32.mrf.mxu0
  %730 = vmatprep.mubr.f32.mxu0 0.0
  %731 = vmatmul.mubr.f32.gmra.mxu0 %v617
  %v732 = vpop.f32.mrf.mxu0
  %v733 = vadd.f32 %v146, %v732
  %v734 = vpop.f32.mrf.mxu0
  %735 = vmatprep.mubr.f32.mxu0 0.0
  %736 = vmatmul.mubr.f32.gmra.mxu0 %v620
  %v737 = vpop.f32.mrf.mxu0
  %v738 = vadd.f32 %v147, %v737
  %v739 = vpop.f32.mrf.mxu0
  %740 = vmatprep.mubr.f32.mxu0 0.0
  %741 = vmatmul.mubr.f32.gmra.mxu0 %v623
  %v742 = vpop.f32.mrf.mxu0
  %v743 = vadd.f32 %v148, %v742
  %v744 = vpop.f32.mrf.mxu0
  %745 = vmatprep.mubr.f32.mxu0 0.0
  %746 = vmatmul.mubr.f32.gmra.mxu0 %v626
  %v747 = vpop.f32.mrf.mxu0
  %v748 = vadd.f32 %v149, %v747
  %v749 = vpop.f32.mrf.mxu0
  %750 = vmatprep.mubr.f32.mxu0 0.0
  %751 = vmatmul.mubr.f32.gmra.mxu0 %v629
  %v752 = vpop.f32.mrf.mxu0
  %v753 = vadd.f32 %v150, %v752
  %v754 = vpop.f32.mrf.mxu0
  %755 = vmatprep.mubr.f32.mxu0 0.0
  %756 = vmatmul.mubr.f32.gmra.mxu0 %v632
  %v757 = vpop.f32.mrf.mxu0
  %v758 = vadd.f32 %v151, %v757
  %v759 = vpop.f32.mrf.mxu0
  %760 = vmatprep.mubr.f32.mxu0 0.0
  %761 = vmatmul.mubr.f32.gmra.mxu0 %v635
  %v762 = vpop.f32.mrf.mxu0
  %v763 = vadd.f32 %v152, %v762
  %v764 = vpop.f32.mrf.mxu0
  %765 = vdwg.mxu0
  %vm766 = vcmask 523264
  %v767 = vsel %vm766, %v269, -inf
  %768 = vmax.xlane.f32.xlu0 %v767
  %v769 = vpop.xlane.xlu0 %768
  %v770 = vsel %vm766, %v274, -inf
  %771 = vmax.xlane.f32.xlu0 %v770
  %v772 = vpop.xlane.xlu0 %771
  %v773 = vsel %vm766, %v279, -inf
  %774 = vmax.xlane.f32.xlu0 %v773
  %v775 = vpop.xlane.xlu0 %774
  %v776 = vsel %vm766, %v284, -inf
  %777 = vmax.xlane.f32.xlu0 %v776
  %v778 = vpop.xlane.xlu0 %777
  %v779 = vsel %vm766, %v289, -inf
  %780 = vmax.xlane.f32.xlu0 %v779
  %v781 = vpop.xlane.xlu0 %780
  %v782 = vsel %vm766, %v294, -inf
  %783 = vmax.xlane.f32.xlu0 %v782
  %v784 = vpop.xlane.xlu0 %783
  %v785 = vsel %vm766, %v299, -inf
  %786 = vmax.xlane.f32.xlu0 %v785
  %v787 = vpop.xlane.xlu0 %786
  %v788 = vsel %vm766, %v304, -inf
  %789 = vmax.xlane.f32.xlu0 %v788
  %v790 = vpop.xlane.xlu0 %789
  %v791 = vsel %vm766, %v422, -inf
  %792 = vmax.xlane.f32.xlu0 %v791
  %v793 = vpop.xlane.xlu0 %792
  %v794 = vsel %vm766, %v427, -inf
  %795 = vmax.xlane.f32.xlu0 %v794
  %v796 = vpop.xlane.xlu0 %795
  %v797 = vsel %vm766, %v432, -inf
  %798 = vmax.xlane.f32.xlu0 %v797
  %v799 = vpop.xlane.xlu0 %798
  %v800 = vsel %vm766, %v437, -inf
  %801 = vmax.xlane.f32.xlu0 %v800
  %v802 = vpop.xlane.xlu0 %801
  %v803 = vsel %vm766, %v442, -inf
  %804 = vmax.xlane.f32.xlu0 %v803
  %v805 = vpop.xlane.xlu0 %804
  %v806 = vsel %vm766, %v447, -inf
  %807 = vmax.xlane.f32.xlu0 %v806
  %v808 = vpop.xlane.xlu0 %807
  %v809 = vsel %vm766, %v452, -inf
  %810 = vmax.xlane.f32.xlu0 %v809
  %v811 = vpop.xlane.xlu0 %810
  %v812 = vsel %vm766, %v457, -inf
  %813 = vmax.xlane.f32.xlu0 %v812
  %v814 = vpop.xlane.xlu0 %813
  %v815 = vsel %vm766, %v575, -inf
  %816 = vmax.xlane.f32.xlu0 %v815
  %v817 = vpop.xlane.xlu0 %816
  %v818 = vsel %vm766, %v580, -inf
  %819 = vmax.xlane.f32.xlu0 %v818
  %v820 = vpop.xlane.xlu0 %819
  %v821 = vsel %vm766, %v585, -inf
  %822 = vmax.xlane.f32.xlu0 %v821
  %v823 = vpop.xlane.xlu0 %822
  %v824 = vsel %vm766, %v590, -inf
  %825 = vmax.xlane.f32.xlu0 %v824
  %v826 = vpop.xlane.xlu0 %825
  %v827 = vsel %vm766, %v595, -inf
  %828 = vmax.xlane.f32.xlu0 %v827
  %v829 = vpop.xlane.xlu0 %828
  %v830 = vsel %vm766, %v600, -inf
  %831 = vmax.xlane.f32.xlu0 %v830
  %v832 = vpop.xlane.xlu0 %831
  %v833 = vsel %vm766, %v605, -inf
  %834 = vmax.xlane.f32.xlu0 %v833
  %v835 = vpop.xlane.xlu0 %834
  %v836 = vsel %vm766, %v610, -inf
  %837 = vmax.xlane.f32.xlu0 %v836
  %v838 = vpop.xlane.xlu0 %837
  %v839 = vsel %vm766, %v728, -inf
  %840 = vmax.xlane.f32.xlu0 %v839
  %v841 = vpop.xlane.xlu0 %840
  %v842 = vsel %vm766, %v733, -inf
  %843 = vmax.xlane.f32.xlu0 %v842
  %v844 = vpop.xlane.xlu0 %843
  %v845 = vsel %vm766, %v738, -inf
  %846 = vmax.xlane.f32.xlu0 %v845
  %v847 = vpop.xlane.xlu0 %846
  %v848 = vsel %vm766, %v743, -inf
  %849 = vmax.xlane.f32.xlu0 %v848
  %v850 = vpop.xlane.xlu0 %849
  %v851 = vsel %vm766, %v748, -inf
  %852 = vmax.xlane.f32.xlu0 %v851
  %v853 = vpop.xlane.xlu0 %852
  %v854 = vsel %vm766, %v753, -inf
  %855 = vmax.xlane.f32.xlu0 %v854
  %v856 = vpop.xlane.xlu0 %855
  %v857 = vsel %vm766, %v758, -inf
  %858 = vmax.xlane.f32.xlu0 %v857
  %v859 = vpop.xlane.xlu0 %858
  %v860 = vsel %vm766, %v763, -inf
  %861 = vmax.xlane.f32.xlu0 %v860
  %v862 = vpop.xlane.xlu0 %861
  %v863 = vsub.f32 %v269, %v769
  %v864 = vsub.f32 %v274, %v772
  %v865 = vsub.f32 %v279, %v775
  %v866 = vsub.f32 %v284, %v778
  %v867 = vsub.f32 %v289, %v781
  %v868 = vsub.f32 %v294, %v784
  %v869 = vsub.f32 %v299, %v787
  %v870 = vsub.f32 %v304, %v790
  %v871 = vsub.f32 %v422, %v793
  %v872 = vsub.f32 %v427, %v796
  %v873 = vsub.f32 %v432, %v799
  %v874 = vsub.f32 %v437, %v802
  %v875 = vsub.f32 %v442, %v805
  %v876 = vsub.f32 %v447, %v808
  %v877 = vsub.f32 %v452, %v811
  %v878 = vsub.f32 %v457, %v814
  %v879 = vsub.f32 %v575, %v817
  %v880 = vsub.f32 %v580, %v820
  %v881 = vsub.f32 %v585, %v823
  %v882 = vsub.f32 %v590, %v826
  %v883 = vsub.f32 %v595, %v829
  %v884 = vsub.f32 %v600, %v832
  %v885 = vsub.f32 %v605, %v835
  %v886 = vsub.f32 %v610, %v838
  %v887 = vsub.f32 %v728, %v841
  %v888 = vsub.f32 %v733, %v844
  %v889 = vsub.f32 %v738, %v847
  %v890 = vsub.f32 %v743, %v850
  %v891 = vsub.f32 %v748, %v853
  %v892 = vsub.f32 %v753, %v856
  %v893 = vsub.f32 %v758, %v859
  %v894 = vsub.f32 %v763, %v862
  %v895 = vmul.f32 %v863, 1.442695
  %v896 = vpow.pop %v895
  %v897 = vmul.f32 %v864, 1.442695
  %v898 = vpow.pop %v897
  %v899 = vmul.f32 %v865, 1.442695
  %v900 = vpow.pop %v899
  %v901 = vmul.f32 %v866, 1.442695
  %v902 = vpow.pop %v901
  %v903 = vmul.f32 %v867, 1.442695
  %v904 = vpow.pop %v903
  %v905 = vmul.f32 %v868, 1.442695
  %v906 = vpow.pop %v905
  %v907 = vmul.f32 %v869, 1.442695
  %v908 = vpow.pop %v907
  %v909 = vmul.f32 %v870, 1.442695
  %v910 = vpow.pop %v909
  %v911 = vmul.f32 %v871, 1.442695
  %v912 = vpow.pop %v911
  %v913 = vmul.f32 %v872, 1.442695
  %v914 = vpow.pop %v913
  %v915 = vmul.f32 %v873, 1.442695
  %v916 = vpow.pop %v915
  %v917 = vmul.f32 %v874, 1.442695
  %v918 = vpow.pop %v917
  %v919 = vmul.f32 %v875, 1.442695
  %v920 = vpow.pop %v919
  %v921 = vmul.f32 %v876, 1.442695
  %v922 = vpow.pop %v921
  %v923 = vmul.f32 %v877, 1.442695
  %v924 = vpow.pop %v923
  %v925 = vmul.f32 %v878, 1.442695
  %v926 = vpow.pop %v925
  %v927 = vmul.f32 %v879, 1.442695
  %v928 = vpow.pop %v927
  %v929 = vmul.f32 %v880, 1.442695
  %v930 = vpow.pop %v929
  %v931 = vmul.f32 %v881, 1.442695
  %v932 = vpow.pop %v931
  %v933 = vmul.f32 %v882, 1.442695
  %v934 = vpow.pop %v933
  %v935 = vmul.f32 %v883, 1.442695
  %v936 = vpow.pop %v935
  %v937 = vmul.f32 %v884, 1.442695
  %v938 = vpow.pop %v937
  %v939 = vmul.f32 %v885, 1.442695
  %v940 = vpow.pop %v939
  %v941 = vmul.f32 %v886, 1.442695
  %v942 = vpow.pop %v941
  %v943 = vmul.f32 %v887, 1.442695
  %v944 = vpow.pop %v943
  %v945 = vmul.f32 %v888, 1.442695
  %v946 = vpow.pop %v945
  %v947 = vmul.f32 %v889, 1.442695
  %v948 = vpow.pop %v947
  %v949 = vmul.f32 %v890, 1.442695
  %v950 = vpow.pop %v949
  %v951 = vmul.f32 %v891, 1.442695
  %v952 = vpow.pop %v951
  %v953 = vmul.f32 %v892, 1.442695
  %v954 = vpow.pop %v953
  %v955 = vmul.f32 %v893, 1.442695
  %v956 = vpow.pop %v955
  %v957 = vmul.f32 %v894, 1.442695
  %v958 = vpow.pop %v957
  %v959 = vsel %vm766, %v896, 0.0
  %960 = vadd.xlane.f32.xlu0 %v959
  %v961 = vpop.xlane.xlu0 %960
  %v962 = vsel %vm766, %v898, 0.0
  %963 = vadd.xlane.f32.xlu0 %v962
  %v964 = vpop.xlane.xlu0 %963
  %v965 = vsel %vm766, %v900, 0.0
  %966 = vadd.xlane.f32.xlu0 %v965
  %v967 = vpop.xlane.xlu0 %966
  %v968 = vsel %vm766, %v902, 0.0
  %969 = vadd.xlane.f32.xlu0 %v968
  %v970 = vpop.xlane.xlu0 %969
  %v971 = vsel %vm766, %v904, 0.0
  %972 = vadd.xlane.f32.xlu0 %v971
  %v973 = vpop.xlane.xlu0 %972
  %v974 = vsel %vm766, %v906, 0.0
  %975 = vadd.xlane.f32.xlu0 %v974
  %v976 = vpop.xlane.xlu0 %975
  %v977 = vsel %vm766, %v908, 0.0
  %978 = vadd.xlane.f32.xlu0 %v977
  %v979 = vpop.xlane.xlu0 %978
  %v980 = vsel %vm766, %v910, 0.0
  %981 = vadd.xlane.f32.xlu0 %v980
  %v982 = vpop.xlane.xlu0 %981
  %v983 = vsel %vm766, %v912, 0.0
  %984 = vadd.xlane.f32.xlu0 %v983
  %v985 = vpop.xlane.xlu0 %984
  %v986 = vsel %vm766, %v914, 0.0
  %987 = vadd.xlane.f32.xlu0 %v986
  %v988 = vpop.xlane.xlu0 %987
  %v989 = vsel %vm766, %v916, 0.0
  %990 = vadd.xlane.f32.xlu0 %v989
  %v991 = vpop.xlane.xlu0 %990
  %v992 = vsel %vm766, %v918, 0.0
  %993 = vadd.xlane.f32.xlu0 %v992
  %v994 = vpop.xlane.xlu0 %993
  %v995 = vsel %vm766, %v920, 0.0
  %996 = vadd.xlane.f32.xlu0 %v995
  %v997 = vpop.xlane.xlu0 %996
  %v998 = vsel %vm766, %v922, 0.0
  %999 = vadd.xlane.f32.xlu0 %v998
  %v1000 = vpop.xlane.xlu0 %999
  %v1001 = vsel %vm766, %v924, 0.0
  %1002 = vadd.xlane.f32.xlu0 %v1001
  %v1003 = vpop.xlane.xlu0 %1002
  %v1004 = vsel %vm766, %v926, 0.0
  %1005 = vadd.xlane.f32.xlu0 %v1004
  %v1006 = vpop.xlane.xlu0 %1005
  %v1007 = vsel %vm766, %v928, 0.0
  %1008 = vadd.xlane.f32.xlu0 %v1007
  %v1009 = vpop.xlane.xlu0 %1008
  %v1010 = vsel %vm766, %v930, 0.0
  %1011 = vadd.xlane.f32.xlu0 %v1010
  %v1012 = vpop.xlane.xlu0 %1011
  %v1013 = vsel %vm766, %v932, 0.0
  %1014 = vadd.xlane.f32.xlu0 %v1013
  %v1015 = vpop.xlane.xlu0 %1014
  %v1016 = vsel %vm766, %v934, 0.0
  %1017 = vadd.xlane.f32.xlu0 %v1016
  %v1018 = vpop.xlane.xlu0 %1017
  %v1019 = vsel %vm766, %v936, 0.0
  %1020 = vadd.xlane.f32.xlu0 %v1019
  %v1021 = vpop.xlane.xlu0 %1020
  %v1022 = vsel %vm766, %v938, 0.0
  %1023 = vadd.xlane.f32.xlu0 %v1022
  %v1024 = vpop.xlane.xlu0 %1023
  %v1025 = vsel %vm766, %v940, 0.0
  %1026 = vadd.xlane.f32.xlu0 %v1025
  %v1027 = vpop.xlane.xlu0 %1026
  %v1028 = vsel %vm766, %v942, 0.0
  %1029 = vadd.xlane.f32.xlu0 %v1028
  %v1030 = vpop.xlane.xlu0 %1029
  %v1031 = vsel %vm766, %v944, 0.0
  %1032 = vadd.xlane.f32.xlu0 %v1031
  %v1033 = vpop.xlane.xlu0 %1032
  %v1034 = vsel %vm766, %v946, 0.0
  %1035 = vadd.xlane.f32.xlu0 %v1034
  %v1036 = vpop.xlane.xlu0 %1035
  %v1037 = vsel %vm766, %v948, 0.0
  %1038 = vadd.xlane.f32.xlu0 %v1037
  %v1039 = vpop.xlane.xlu0 %1038
  %v1040 = vsel %vm766, %v950, 0.0
  %1041 = vadd.xlane.f32.xlu0 %v1040
  %v1042 = vpop.xlane.xlu0 %1041
  %v1043 = vsel %vm766, %v952, 0.0
  %1044 = vadd.xlane.f32.xlu0 %v1043
  %v1045 = vpop.xlane.xlu0 %1044
  %v1046 = vsel %vm766, %v954, 0.0
  %1047 = vadd.xlane.f32.xlu0 %v1046
  %v1048 = vpop.xlane.xlu0 %1047
  %v1049 = vsel %vm766, %v956, 0.0
  %1050 = vadd.xlane.f32.xlu0 %v1049
  %v1051 = vpop.xlane.xlu0 %1050
  %v1052 = vsel %vm766, %v958, 0.0
  %1053 = vadd.xlane.f32.xlu0 %v1052
  %v1054 = vpop.xlane.xlu0 %1053
  %v1055 = vmul.f32 %v961, 0.9
  %v1056 = vmul.f32 %v964, 0.9
  %v1057 = vmul.f32 %v967, 0.9
  %v1058 = vmul.f32 %v970, 0.9
  %v1059 = vmul.f32 %v973, 0.9
  %v1060 = vmul.f32 %v976, 0.9
  %v1061 = vmul.f32 %v979, 0.9
  %v1062 = vmul.f32 %v982, 0.9
  %v1063 = vmul.f32 %v985, 0.9
  %v1064 = vmul.f32 %v988, 0.9
  %v1065 = vmul.f32 %v991, 0.9
  %v1066 = vmul.f32 %v994, 0.9
  %v1067 = vmul.f32 %v997, 0.9
  %v1068 = vmul.f32 %v1000, 0.9
  %v1069 = vmul.f32 %v1003, 0.9
  %v1070 = vmul.f32 %v1006, 0.9
  %v1071 = vmul.f32 %v1009, 0.9
  %v1072 = vmul.f32 %v1012, 0.9
  %v1073 = vmul.f32 %v1015, 0.9
  %v1074 = vmul.f32 %v1018, 0.9
  %v1075 = vmul.f32 %v1021, 0.9
  %v1076 = vmul.f32 %v1024, 0.9
  %v1077 = vmul.f32 %v1027, 0.9
  %v1078 = vmul.f32 %v1030, 0.9
  %v1079 = vmul.f32 %v1033, 0.9
  %v1080 = vmul.f32 %v1036, 0.9
  %v1081 = vmul.f32 %v1039, 0.9
  %v1082 = vmul.f32 %v1042, 0.9
  %v1083 = vmul.f32 %v1045, 0.9
  %v1084 = vmul.f32 %v1048, 0.9
  %v1085 = vmul.f32 %v1051, 0.9
  %v1086 = vmul.f32 %v1054, 0.9
  %v1087 = vrcp.pop %v1055
  %v1088 = vrcp.pop %v1056
  %v1089 = vrcp.pop %v1057
  %v1090 = vrcp.pop %v1058
  %v1091 = vrcp.pop %v1059
  %v1092 = vrcp.pop %v1060
  %v1093 = vrcp.pop %v1061
  %v1094 = vrcp.pop %v1062
  %v1095 = vrcp.pop %v1063
  %v1096 = vrcp.pop %v1064
  %v1097 = vrcp.pop %v1065
  %v1098 = vrcp.pop %v1066
  %v1099 = vrcp.pop %v1067
  %v1100 = vrcp.pop %v1068
  %v1101 = vrcp.pop %v1069
  %v1102 = vrcp.pop %v1070
  %v1103 = vrcp.pop %v1071
  %v1104 = vrcp.pop %v1072
  %v1105 = vrcp.pop %v1073
  %v1106 = vrcp.pop %v1074
  %v1107 = vrcp.pop %v1075
  %v1108 = vrcp.pop %v1076
  %v1109 = vrcp.pop %v1077
  %v1110 = vrcp.pop %v1078
  %v1111 = vrcp.pop %v1079
  %v1112 = vrcp.pop %v1080
  %v1113 = vrcp.pop %v1081
  %v1114 = vrcp.pop %v1082
  %v1115 = vrcp.pop %v1083
  %v1116 = vrcp.pop %v1084
  %v1117 = vrcp.pop %v1085
  %v1118 = vrcp.pop %v1086
  %v1119 = vlaneseq
  %v1120 = vshrl.u32 %v1119, 7
  %v1121 = vadd.s32 %v1120, 8
  %v1122 = vadd.s32 %v1120, 16
  %v1123 = vadd.s32 %v1120, 24
  %v1124 = vadd.s32 %v1120, 32
  %v1125 = vadd.s32 %v1120, 40
  %v1126 = vadd.s32 %v1120, 48
  %v1127 = vadd.s32 %v1120, 56
  %v1128 = vlaneseq
  %v1129 = vand.u32 %v1128, 127
  %v1130 = vmul.u32 %v1120, 64
  %v1131 = vmul.u32 %v1121, 64
  %v1132 = vmul.u32 %v1122, 64
  %v1133 = vmul.u32 %v1123, 64
  %v1134 = vmul.u32 %v1124, 64
  %v1135 = vmul.u32 %v1125, 64
  %v1136 = vmul.u32 %v1126, 64
  %v1137 = vmul.u32 %v1127, 64
  %v1138 = vadd.s32 %v1130, 4096
  %v1139 = vadd.s32 %v1131, 4096
  %v1140 = vadd.s32 %v1132, 4096
  %v1141 = vadd.s32 %v1133, 4096
  %v1142 = vadd.s32 %v1134, 4096
  %v1143 = vadd.s32 %v1135, 4096
  %v1144 = vadd.s32 %v1136, 4096
  %v1145 = vadd.s32 %v1137, 4096
  %v1146 = vadd.s32 %v1130, 8192
  %v1147 = vadd.s32 %v1131, 8192
  %v1148 = vadd.s32 %v1132, 8192
  %v1149 = vadd.s32 %v1133, 8192
  %v1150 = vadd.s32 %v1134, 8192
  %v1151 = vadd.s32 %v1135, 8192
  %v1152 = vadd.s32 %v1136, 8192
  %v1153 = vadd.s32 %v1137, 8192
  %v1154 = vadd.s32 %v1130, 12288
  %v1155 = vadd.s32 %v1131, 12288
  %v1156 = vadd.s32 %v1132, 12288
  %v1157 = vadd.s32 %v1133, 12288
  %v1158 = vadd.s32 %v1134, 12288
  %v1159 = vadd.s32 %v1135, 12288
  %v1160 = vadd.s32 %v1136, 12288
  %v1161 = vadd.s32 %v1137, 12288
  %v1162 = vadd.s32 %v1130, %v1129
  %v1163 = vadd.s32 %v1131, %v1129
  %v1164 = vadd.s32 %v1132, %v1129
  %v1165 = vadd.s32 %v1133, %v1129
  %v1166 = vadd.s32 %v1134, %v1129
  %v1167 = vadd.s32 %v1135, %v1129
  %v1168 = vadd.s32 %v1136, %v1129
  %v1169 = vadd.s32 %v1137, %v1129
  %v1170 = vadd.s32 %v1138, %v1129
  %v1171 = vadd.s32 %v1139, %v1129
  %v1172 = vadd.s32 %v1140, %v1129
  %v1173 = vadd.s32 %v1141, %v1129
  %v1174 = vadd.s32 %v1142, %v1129
  %v1175 = vadd.s32 %v1143, %v1129
  %v1176 = vadd.s32 %v1144, %v1129
  %v1177 = vadd.s32 %v1145, %v1129
  %v1178 = vadd.s32 %v1146, %v1129
  %v1179 = vadd.s32 %v1147, %v1129
  %v1180 = vadd.s32 %v1148, %v1129
  %v1181 = vadd.s32 %v1149, %v1129
  %v1182 = vadd.s32 %v1150, %v1129
  %v1183 = vadd.s32 %v1151, %v1129
  %v1184 = vadd.s32 %v1152, %v1129
  %v1185 = vadd.s32 %v1153, %v1129
  %v1186 = vadd.s32 %v1154, %v1129
  %v1187 = vadd.s32 %v1155, %v1129
  %v1188 = vadd.s32 %v1156, %v1129
  %v1189 = vadd.s32 %v1157, %v1129
  %v1190 = vadd.s32 %v1158, %v1129
  %v1191 = vadd.s32 %v1159, %v1129
  %v1192 = vadd.s32 %v1160, %v1129
  %v1193 = vadd.s32 %v1161, %v1129
  %v1194 = vshrl.u32 %v1162, 16
  %v1195 = vshrl.u32 %v1163, 16
  %v1196 = vshrl.u32 %v1164, 16
  %v1197 = vshrl.u32 %v1165, 16
  %v1198 = vshrl.u32 %v1166, 16
  %v1199 = vshrl.u32 %v1167, 16
  %v1200 = vshrl.u32 %v1168, 16
  %v1201 = vshrl.u32 %v1169, 16
  %v1202 = vshrl.u32 %v1170, 16
  %v1203 = vshrl.u32 %v1171, 16
  %v1204 = vshrl.u32 %v1172, 16
  %v1205 = vshrl.u32 %v1173, 16
  %v1206 = vshrl.u32 %v1174, 16
  %v1207 = vshrl.u32 %v1175, 16
  %v1208 = vshrl.u32 %v1176, 16
  %v1209 = vshrl.u32 %v1177, 16
  %v1210 = vshrl.u32 %v1178, 16
  %v1211 = vshrl.u32 %v1179, 16
  %v1212 = vshrl.u32 %v1180, 16
  %v1213 = vshrl.u32 %v1181, 16
  %v1214 = vshrl.u32 %v1182, 16
  %v1215 = vshrl.u32 %v1183, 16
  %v1216 = vshrl.u32 %v1184, 16
  %v1217 = vshrl.u32 %v1185, 16
  %v1218 = vshrl.u32 %v1186, 16
  %v1219 = vshrl.u32 %v1187, 16
  %v1220 = vshrl.u32 %v1188, 16
  %v1221 = vshrl.u32 %v1189, 16
  %v1222 = vshrl.u32 %v1190, 16
  %v1223 = vshrl.u32 %v1191, 16
  %v1224 = vshrl.u32 %v1192, 16
  %v1225 = vshrl.u32 %v1193, 16
  %v1226 = vxor.u32 %v1162, %v1194
  %v1227 = vxor.u32 %v1163, %v1195
  %v1228 = vxor.u32 %v1164, %v1196
  %v1229 = vxor.u32 %v1165, %v1197
  %v1230 = vxor.u32 %v1166, %v1198
  %v1231 = vxor.u32 %v1167, %v1199
  %v1232 = vxor.u32 %v1168, %v1200
  %v1233 = vxor.u32 %v1169, %v1201
  %v1234 = vxor.u32 %v1170, %v1202
  %v1235 = vxor.u32 %v1171, %v1203
  %v1236 = vxor.u32 %v1172, %v1204
  %v1237 = vxor.u32 %v1173, %v1205
  %v1238 = vxor.u32 %v1174, %v1206
  %v1239 = vxor.u32 %v1175, %v1207
  %v1240 = vxor.u32 %v1176, %v1208
  %v1241 = vxor.u32 %v1177, %v1209
  %v1242 = vxor.u32 %v1178, %v1210
  %v1243 = vxor.u32 %v1179, %v1211
  %v1244 = vxor.u32 %v1180, %v1212
  %v1245 = vxor.u32 %v1181, %v1213
  %v1246 = vxor.u32 %v1182, %v1214
  %v1247 = vxor.u32 %v1183, %v1215
  %v1248 = vxor.u32 %v1184, %v1216
  %v1249 = vxor.u32 %v1185, %v1217
  %v1250 = vxor.u32 %v1186, %v1218
  %v1251 = vxor.u32 %v1187, %v1219
  %v1252 = vxor.u32 %v1188, %v1220
  %v1253 = vxor.u32 %v1189, %v1221
  %v1254 = vxor.u32 %v1190, %v1222
  %v1255 = vxor.u32 %v1191, %v1223
  %v1256 = vxor.u32 %v1192, %v1224
  %v1257 = vxor.u32 %v1193, %v1225
  %v1258 = vmul.u32 %v1226, 2146121005
  %v1259 = vmul.u32 %v1227, 2146121005
  %v1260 = vmul.u32 %v1228, 2146121005
  %v1261 = vmul.u32 %v1229, 2146121005
  %v1262 = vmul.u32 %v1230, 2146121005
  %v1263 = vmul.u32 %v1231, 2146121005
  %v1264 = vmul.u32 %v1232, 2146121005
  %v1265 = vmul.u32 %v1233, 2146121005
  %v1266 = vmul.u32 %v1234, 2146121005
  %v1267 = vmul.u32 %v1235, 2146121005
  %v1268 = vmul.u32 %v1236, 2146121005
  %v1269 = vmul.u32 %v1237, 2146121005
  %v1270 = vmul.u32 %v1238, 2146121005
  %v1271 = vmul.u32 %v1239, 2146121005
  %v1272 = vmul.u32 %v1240, 2146121005
  %v1273 = vmul.u32 %v1241, 2146121005
  %v1274 = vmul.u32 %v1242, 2146121005
  %v1275 = vmul.u32 %v1243, 2146121005
  %v1276 = vmul.u32 %v1244, 2146121005
  %v1277 = vmul.u32 %v1245, 2146121005
  %v1278 = vmul.u32 %v1246, 2146121005
  %v1279 = vmul.u32 %v1247, 2146121005
  %v1280 = vmul.u32 %v1248, 2146121005
  %v1281 = vmul.u32 %v1249, 2146121005
  %v1282 = vmul.u32 %v1250, 2146121005
  %v1283 = vmul.u32 %v1251, 2146121005
  %v1284 = vmul.u32 %v1252, 2146121005
  %v1285 = vmul.u32 %v1253, 2146121005
  %v1286 = vmul.u32 %v1254, 2146121005
  %v1287 = vmul.u32 %v1255, 2146121005
  %v1288 = vmul.u32 %v1256, 2146121005
  %v1289 = vmul.u32 %v1257, 2146121005
  %v1290 = vshrl.u32 %v1258, 15
  %v1291 = vshrl.u32 %v1259, 15
  %v1292 = vshrl.u32 %v1260, 15
  %v1293 = vshrl.u32 %v1261, 15
  %v1294 = vshrl.u32 %v1262, 15
  %v1295 = vshrl.u32 %v1263, 15
  %v1296 = vshrl.u32 %v1264, 15
  %v1297 = vshrl.u32 %v1265, 15
  %v1298 = vshrl.u32 %v1266, 15
  %v1299 = vshrl.u32 %v1267, 15
  %v1300 = vshrl.u32 %v1268, 15
  %v1301 = vshrl.u32 %v1269, 15
  %v1302 = vshrl.u32 %v1270, 15
  %v1303 = vshrl.u32 %v1271, 15
  %v1304 = vshrl.u32 %v1272, 15
  %v1305 = vshrl.u32 %v1273, 15
  %v1306 = vshrl.u32 %v1274, 15
  %v1307 = vshrl.u32 %v1275, 15
  %v1308 = vshrl.u32 %v1276, 15
  %v1309 = vshrl.u32 %v1277, 15
  %v1310 = vshrl.u32 %v1278, 15
  %v1311 = vshrl.u32 %v1279, 15
  %v1312 = vshrl.u32 %v1280, 15
  %v1313 = vshrl.u32 %v1281, 15
  %v1314 = vshrl.u32 %v1282, 15
  %v1315 = vshrl.u32 %v1283, 15
  %v1316 = vshrl.u32 %v1284, 15
  %v1317 = vshrl.u32 %v1285, 15
  %v1318 = vshrl.u32 %v1286, 15
  %v1319 = vshrl.u32 %v1287, 15
  %v1320 = vshrl.u32 %v1288, 15
  %v1321 = vshrl.u32 %v1289, 15
  %v1322 = vxor.u32 %v1258, %v1290
  %v1323 = vxor.u32 %v1259, %v1291
  %v1324 = vxor.u32 %v1260, %v1292
  %v1325 = vxor.u32 %v1261, %v1293
  %v1326 = vxor.u32 %v1262, %v1294
  %v1327 = vxor.u32 %v1263, %v1295
  %v1328 = vxor.u32 %v1264, %v1296
  %v1329 = vxor.u32 %v1265, %v1297
  %v1330 = vxor.u32 %v1266, %v1298
  %v1331 = vxor.u32 %v1267, %v1299
  %v1332 = vxor.u32 %v1268, %v1300
  %v1333 = vxor.u32 %v1269, %v1301
  %v1334 = vxor.u32 %v1270, %v1302
  %v1335 = vxor.u32 %v1271, %v1303
  %v1336 = vxor.u32 %v1272, %v1304
  %v1337 = vxor.u32 %v1273, %v1305
  %v1338 = vxor.u32 %v1274, %v1306
  %v1339 = vxor.u32 %v1275, %v1307
  %v1340 = vxor.u32 %v1276, %v1308
  %v1341 = vxor.u32 %v1277, %v1309
  %v1342 = vxor.u32 %v1278, %v1310
  %v1343 = vxor.u32 %v1279, %v1311
  %v1344 = vxor.u32 %v1280, %v1312
  %v1345 = vxor.u32 %v1281, %v1313
  %v1346 = vxor.u32 %v1282, %v1314
  %v1347 = vxor.u32 %v1283, %v1315
  %v1348 = vxor.u32 %v1284, %v1316
  %v1349 = vxor.u32 %v1285, %v1317
  %v1350 = vxor.u32 %v1286, %v1318
  %v1351 = vxor.u32 %v1287, %v1319
  %v1352 = vxor.u32 %v1288, %v1320
  %v1353 = vxor.u32 %v1289, %v1321
  %v1354 = vmul.u32 %v1322, 2221713035
  %v1355 = vmul.u32 %v1323, 2221713035
  %v1356 = vmul.u32 %v1324, 2221713035
  %v1357 = vmul.u32 %v1325, 2221713035
  %v1358 = vmul.u32 %v1326, 2221713035
  %v1359 = vmul.u32 %v1327, 2221713035
  %v1360 = vmul.u32 %v1328, 2221713035
  %v1361 = vmul.u32 %v1329, 2221713035
  %v1362 = vmul.u32 %v1330, 2221713035
  %v1363 = vmul.u32 %v1331, 2221713035
  %v1364 = vmul.u32 %v1332, 2221713035
  %v1365 = vmul.u32 %v1333, 2221713035
  %v1366 = vmul.u32 %v1334, 2221713035
  %v1367 = vmul.u32 %v1335, 2221713035
  %v1368 = vmul.u32 %v1336, 2221713035
  %v1369 = vmul.u32 %v1337, 2221713035
  %v1370 = vmul.u32 %v1338, 2221713035
  %v1371 = vmul.u32 %v1339, 2221713035
  %v1372 = vmul.u32 %v1340, 2221713035
  %v1373 = vmul.u32 %v1341, 2221713035
  %v1374 = vmul.u32 %v1342, 2221713035
  %v1375 = vmul.u32 %v1343, 2221713035
  %v1376 = vmul.u32 %v1344, 2221713035
  %v1377 = vmul.u32 %v1345, 2221713035
  %v1378 = vmul.u32 %v1346, 2221713035
  %v1379 = vmul.u32 %v1347, 2221713035
  %v1380 = vmul.u32 %v1348, 2221713035
  %v1381 = vmul.u32 %v1349, 2221713035
  %v1382 = vmul.u32 %v1350, 2221713035
  %v1383 = vmul.u32 %v1351, 2221713035
  %v1384 = vmul.u32 %v1352, 2221713035
  %v1385 = vmul.u32 %v1353, 2221713035
  %v1386 = vshrl.u32 %v1354, 16
  %v1387 = vshrl.u32 %v1355, 16
  %v1388 = vshrl.u32 %v1356, 16
  %v1389 = vshrl.u32 %v1357, 16
  %v1390 = vshrl.u32 %v1358, 16
  %v1391 = vshrl.u32 %v1359, 16
  %v1392 = vshrl.u32 %v1360, 16
  %v1393 = vshrl.u32 %v1361, 16
  %v1394 = vshrl.u32 %v1362, 16
  %v1395 = vshrl.u32 %v1363, 16
  %v1396 = vshrl.u32 %v1364, 16
  %v1397 = vshrl.u32 %v1365, 16
  %v1398 = vshrl.u32 %v1366, 16
  %v1399 = vshrl.u32 %v1367, 16
  %v1400 = vshrl.u32 %v1368, 16
  %v1401 = vshrl.u32 %v1369, 16
  %v1402 = vshrl.u32 %v1370, 16
  %v1403 = vshrl.u32 %v1371, 16
  %v1404 = vshrl.u32 %v1372, 16
  %v1405 = vshrl.u32 %v1373, 16
  %v1406 = vshrl.u32 %v1374, 16
  %v1407 = vshrl.u32 %v1375, 16
  %v1408 = vshrl.u32 %v1376, 16
  %v1409 = vshrl.u32 %v1377, 16
  %v1410 = vshrl.u32 %v1378, 16
  %v1411 = vshrl.u32 %v1379, 16
  %v1412 = vshrl.u32 %v1380, 16
  %v1413 = vshrl.u32 %v1381, 16
  %v1414 = vshrl.u32 %v1382, 16
  %v1415 = vshrl.u32 %v1383, 16
  %v1416 = vshrl.u32 %v1384, 16
  %v1417 = vshrl.u32 %v1385, 16
  %v1418 = vxor.u32 %v1354, %v1386
  %v1419 = vxor.u32 %v1355, %v1387
  %v1420 = vxor.u32 %v1356, %v1388
  %v1421 = vxor.u32 %v1357, %v1389
  %v1422 = vxor.u32 %v1358, %v1390
  %v1423 = vxor.u32 %v1359, %v1391
  %v1424 = vxor.u32 %v1360, %v1392
  %v1425 = vxor.u32 %v1361, %v1393
  %v1426 = vxor.u32 %v1362, %v1394
  %v1427 = vxor.u32 %v1363, %v1395
  %v1428 = vxor.u32 %v1364, %v1396
  %v1429 = vxor.u32 %v1365, %v1397
  %v1430 = vxor.u32 %v1366, %v1398
  %v1431 = vxor.u32 %v1367, %v1399
  %v1432 = vxor.u32 %v1368, %v1400
  %v1433 = vxor.u32 %v1369, %v1401
  %v1434 = vxor.u32 %v1370, %v1402
  %v1435 = vxor.u32 %v1371, %v1403
  %v1436 = vxor.u32 %v1372, %v1404
  %v1437 = vxor.u32 %v1373, %v1405
  %v1438 = vxor.u32 %v1374, %v1406
  %v1439 = vxor.u32 %v1375, %v1407
  %v1440 = vxor.u32 %v1376, %v1408
  %v1441 = vxor.u32 %v1377, %v1409
  %v1442 = vxor.u32 %v1378, %v1410
  %v1443 = vxor.u32 %v1379, %v1411
  %v1444 = vxor.u32 %v1380, %v1412
  %v1445 = vxor.u32 %v1381, %v1413
  %v1446 = vxor.u32 %v1382, %v1414
  %v1447 = vxor.u32 %v1383, %v1415
  %v1448 = vxor.u32 %v1384, %v1416
  %v1449 = vxor.u32 %v1385, %v1417
  %v1450 = vand.u32 %v1418, 16777215
  %v1451 = vand.u32 %v1419, 16777215
  %v1452 = vand.u32 %v1420, 16777215
  %v1453 = vand.u32 %v1421, 16777215
  %v1454 = vand.u32 %v1422, 16777215
  %v1455 = vand.u32 %v1423, 16777215
  %v1456 = vand.u32 %v1424, 16777215
  %v1457 = vand.u32 %v1425, 16777215
  %v1458 = vand.u32 %v1426, 16777215
  %v1459 = vand.u32 %v1427, 16777215
  %v1460 = vand.u32 %v1428, 16777215
  %v1461 = vand.u32 %v1429, 16777215
  %v1462 = vand.u32 %v1430, 16777215
  %v1463 = vand.u32 %v1431, 16777215
  %v1464 = vand.u32 %v1432, 16777215
  %v1465 = vand.u32 %v1433, 16777215
  %v1466 = vand.u32 %v1434, 16777215
  %v1467 = vand.u32 %v1435, 16777215
  %v1468 = vand.u32 %v1436, 16777215
  %v1469 = vand.u32 %v1437, 16777215
  %v1470 = vand.u32 %v1438, 16777215
  %v1471 = vand.u32 %v1439, 16777215
  %v1472 = vand.u32 %v1440, 16777215
  %v1473 = vand.u32 %v1441, 16777215
  %v1474 = vand.u32 %v1442, 16777215
  %v1475 = vand.u32 %v1443, 16777215
  %v1476 = vand.u32 %v1444, 16777215
  %v1477 = vand.u32 %v1445, 16777215
  %v1478 = vand.u32 %v1446, 16777215
  %v1479 = vand.u32 %v1447, 16777215
  %v1480 = vand.u32 %v1448, 16777215
  %v1481 = vand.u32 %v1449, 16777215
  %vm1482 = vcmp.ge.u32.totalorder %v1450, 1677721
  %vm1483 = vcmp.ge.u32.totalorder %v1451, 1677721
  %vm1484 = vcmp.ge.u32.totalorder %v1452, 1677721
  %vm1485 = vcmp.ge.u32.totalorder %v1453, 1677721
  %vm1486 = vcmp.ge.u32.totalorder %v1454, 1677721
  %vm1487 = vcmp.ge.u32.totalorder %v1455, 1677721
  %vm1488 = vcmp.ge.u32.totalorder %v1456, 1677721
  %vm1489 = vcmp.ge.u32.totalorder %v1457, 1677721
  %vm1490 = vcmp.ge.u32.totalorder %v1458, 1677721
  %vm1491 = vcmp.ge.u32.totalorder %v1459, 1677721
  %vm1492 = vcmp.ge.u32.totalorder %v1460, 1677721
  %vm1493 = vcmp.ge.u32.totalorder %v1461, 1677721
  %vm1494 = vcmp.ge.u32.totalorder %v1462, 1677721
  %vm1495 = vcmp.ge.u32.totalorder %v1463, 1677721
  %vm1496 = vcmp.ge.u32.totalorder %v1464, 1677721
  %vm1497 = vcmp.ge.u32.totalorder %v1465, 1677721
  %vm1498 = vcmp.ge.u32.totalorder %v1466, 1677721
  %vm1499 = vcmp.ge.u32.totalorder %v1467, 1677721
  %vm1500 = vcmp.ge.u32.totalorder %v1468, 1677721
  %vm1501 = vcmp.ge.u32.totalorder %v1469, 1677721
  %vm1502 = vcmp.ge.u32.totalorder %v1470, 1677721
  %vm1503 = vcmp.ge.u32.totalorder %v1471, 1677721
  %vm1504 = vcmp.ge.u32.totalorder %v1472, 1677721
  %vm1505 = vcmp.ge.u32.totalorder %v1473, 1677721
  %vm1506 = vcmp.ge.u32.totalorder %v1474, 1677721
  %vm1507 = vcmp.ge.u32.totalorder %v1475, 1677721
  %vm1508 = vcmp.ge.u32.totalorder %v1476, 1677721
  %vm1509 = vcmp.ge.u32.totalorder %v1477, 1677721
  %vm1510 = vcmp.ge.u32.totalorder %v1478, 1677721
  %vm1511 = vcmp.ge.u32.totalorder %v1479, 1677721
  %vm1512 = vcmp.ge.u32.totalorder %v1480, 1677721
  %vm1513 = vcmp.ge.u32.totalorder %v1481, 1677721
  %v1514 = vmul.f32 %v896, %v1087
  %v1515 = vmul.f32 %v898, %v1088
  %v1516 = vmul.f32 %v900, %v1089
  %v1517 = vmul.f32 %v902, %v1090
  %v1518 = vmul.f32 %v904, %v1091
  %v1519 = vmul.f32 %v906, %v1092
  %v1520 = vmul.f32 %v908, %v1093
  %v1521 = vmul.f32 %v910, %v1094
  %v1522 = vmul.f32 %v912, %v1095
  %v1523 = vmul.f32 %v914, %v1096
  %v1524 = vmul.f32 %v916, %v1097
  %v1525 = vmul.f32 %v918, %v1098
  %v1526 = vmul.f32 %v920, %v1099
  %v1527 = vmul.f32 %v922, %v1100
  %v1528 = vmul.f32 %v924, %v1101
  %v1529 = vmul.f32 %v926, %v1102
  %v1530 = vmul.f32 %v928, %v1103
  %v1531 = vmul.f32 %v930, %v1104
  %v1532 = vmul.f32 %v932, %v1105
  %v1533 = vmul.f32 %v934, %v1106
  %v1534 = vmul.f32 %v936, %v1107
  %v1535 = vmul.f32 %v938, %v1108
  %v1536 = vmul.f32 %v940, %v1109
  %v1537 = vmul.f32 %v942, %v1110
  %v1538 = vmul.f32 %v944, %v1111
  %v1539 = vmul.f32 %v946, %v1112
  %v1540 = vmul.f32 %v948, %v1113
  %v1541 = vmul.f32 %v950, %v1114
  %v1542 = vmul.f32 %v952, %v1115
  %v1543 = vmul.f32 %v954, %v1116
  %v1544 = vmul.f32 %v956, %v1117
  %v1545 = vmul.f32 %v958, %v1118
  %v1546 = vsel %vm1482, %v1514, 0.0
  %v1547 = vsel %vm1483, %v1515, 0.0
  %v1548 = vsel %vm1484, %v1516, 0.0
  %v1549 = vsel %vm1485, %v1517, 0.0
  %v1550 = vsel %vm1486, %v1518, 0.0
  %v1551 = vsel %vm1487, %v1519, 0.0
  %v1552 = vsel %vm1488, %v1520, 0.0
  %v1553 = vsel %vm1489, %v1521, 0.0
  %v1554 = vsel %vm1490, %v1522, 0.0
  %v1555 = vsel %vm1491, %v1523, 0.0
  %v1556 = vsel %vm1492, %v1524, 0.0
  %v1557 = vsel %vm1493, %v1525, 0.0
  %v1558 = vsel %vm1494, %v1526, 0.0
  %v1559 = vsel %vm1495, %v1527, 0.0
  %v1560 = vsel %vm1496, %v1528, 0.0
  %v1561 = vsel %vm1497, %v1529, 0.0
  %v1562 = vsel %vm1498, %v1530, 0.0
  %v1563 = vsel %vm1499, %v1531, 0.0
  %v1564 = vsel %vm1500, %v1532, 0.0
  %v1565 = vsel %vm1501, %v1533, 0.0
  %v1566 = vsel %vm1502, %v1534, 0.0
  %v1567 = vsel %vm1503, %v1535, 0.0
  %v1568 = vsel %vm1504, %v1536, 0.0
  %v1569 = vsel %vm1505, %v1537, 0.0
  %v1570 = vsel %vm1506, %v1538, 0.0
  %v1571 = vsel %vm1507, %v1539, 0.0
  %v1572 = vsel %vm1508, %v1540, 0.0
  %v1573 = vsel %vm1509, %v1541, 0.0
  %v1574 = vsel %vm1510, %v1542, 0.0
  %v1575 = vsel %vm1511, %v1543, 0.0
  %v1576 = vsel %vm1512, %v1544, 0.0
  %v1577 = vsel %vm1513, %v1545, 0.0
  %v1579 = vsel %vm766, %v1546, 0
  %v1582 = vsel %vm766, %v1547, 0
  %v1585 = vsel %vm766, %v1548, 0
  %v1588 = vsel %vm766, %v1549, 0
  %v1591 = vsel %vm766, %v1550, 0
  %v1594 = vsel %vm766, %v1551, 0
  %v1597 = vsel %vm766, %v1552, 0
  %v1600 = vsel %vm766, %v1553, 0
  %1602 = vmatprep.subr.mxu0 0.0
  %1603 = vmatpush1.msra.mxu0 0.0
  %1604 = vmatprep.subr.mxu0 0.0
  %1605 = vmatpush1.msra.mxu0 0.0
  %1606 = vmatprep.subr.mxu0 0.0
  %1607 = vmatpush1.msra.mxu0 0.0
  %1608 = vmatprep.subr.mxu0 0.0
  %1609 = vmatpush1.msra.mxu0 0.0
  %1610 = vmatprep.subr.mxu0 0.0
  %1611 = vmatpush1.msra.mxu0 0.0
  %1612 = vmatprep.subr.mxu0 0.0
  %1613 = vmatpush1.msra.mxu0 0.0
  %1614 = vmatprep.subr.mxu0 0.0
  %1615 = vmatpush1.msra.mxu0 0.0
  %1616 = vmatprep.subr.mxu0 0.0
  %1617 = vmatpush1.msra.mxu0 0.0
  %1618 = vmatprep.subr.mxu0 0.0
  %1619 = vmatpush1.msra.mxu0 %v120
  %1620 = vmatprep.subr.mxu0 0.0
  %1621 = vmatpush1.msra.mxu0 %v119
  %1622 = vmatprep.subr.mxu0 0.0
  %1623 = vmatpush1.msra.mxu0 %v118
  %1624 = vmatprep.subr.mxu0 0.0
  %1625 = vmatpush1.msra.mxu0 %v117
  %1626 = vmatprep.subr.mxu0 0.0
  %1627 = vmatpush1.msra.mxu0 %v116
  %1628 = vmatprep.subr.mxu0 0.0
  %1629 = vmatpush1.msra.mxu0 %v115
  %1630 = vmatprep.subr.mxu0 0.0
  %1631 = vmatpush1.msra.mxu0 %v114
  %1632 = vmatprep.subr.mxu0 0.0
  %1633 = vmatpush1.msra.mxu0 %v113
  %1634 = vmatprep.subr.mxu0 0.0
  %1635 = vmatpush2.msra.mxu0 0.0
  %1636 = vmatprep.subr.mxu0 0.0
  %1637 = vmatpush2.msra.mxu0 0.0
  %1638 = vmatprep.subr.mxu0 0.0
  %1639 = vmatpush2.msra.mxu0 0.0
  %1640 = vmatprep.subr.mxu0 0.0
  %1641 = vmatpush2.msra.mxu0 0.0
  %1642 = vmatprep.subr.mxu0 0.0
  %1643 = vmatpush2.msra.mxu0 0.0
  %1644 = vmatprep.subr.mxu0 0.0
  %1645 = vmatpush2.msra.mxu0 0.0
  %1646 = vmatprep.subr.mxu0 0.0
  %1647 = vmatpush2.msra.mxu0 0.0
  %1648 = vmatprep.subr.mxu0 0.0
  %1649 = vmatpush2.msra.mxu0 0.0
  %1650 = vmatprep.subr.mxu0 0.0
  %1651 = vmatpush2.msra.mxu0 0.0
  %1652 = vmatprep.subr.mxu0 0.0
  %1653 = vmatpush2.msra.mxu0 0.0
  %1654 = vmatprep.subr.mxu0 0.0
  %1655 = vmatpush2.msra.mxu0 0.0
  %1656 = vmatprep.subr.mxu0 0.0
  %1657 = vmatpush2.msra.mxu0 0.0
  %1658 = vmatprep.subr.mxu0 0.0
  %1659 = vmatpush2.msra.mxu0 0.0
  %1660 = vmatprep.subr.mxu0 0.0
  %1661 = vmatpush2.msra.mxu0 0.0
  %1662 = vmatprep.subr.mxu0 0.0
  %1663 = vmatpush2.msra.mxu0 0.0
  %1664 = vmatprep.subr.mxu0 0.0
  %1665 = vmatpush2.msra.mxu0 0.0
  %1666 = vmatprep.mubr.f32.mxu0 0.0
  %1667 = vmatmul.mubr.f32.gmra.mxu0 %v1579
  %v1668 = vpop.f32.mrf.mxu0
  %v1669 = vadd.f32 0.0, %v1668
  %v1670 = vpop.f32.mrf.mxu0
  %1671 = vmatprep.mubr.f32.mxu0 0.0
  %1672 = vmatmul.mubr.f32.gmra.mxu0 %v1582
  %v1673 = vpop.f32.mrf.mxu0
  %v1674 = vadd.f32 0.0, %v1673
  %v1675 = vpop.f32.mrf.mxu0
  %1676 = vmatprep.mubr.f32.mxu0 0.0
  %1677 = vmatmul.mubr.f32.gmra.mxu0 %v1585
  %v1678 = vpop.f32.mrf.mxu0
  %v1679 = vadd.f32 0.0, %v1678
  %v1680 = vpop.f32.mrf.mxu0
  %1681 = vmatprep.mubr.f32.mxu0 0.0
  %1682 = vmatmul.mubr.f32.gmra.mxu0 %v1588
  %v1683 = vpop.f32.mrf.mxu0
  %v1684 = vadd.f32 0.0, %v1683
  %v1685 = vpop.f32.mrf.mxu0
  %1686 = vmatprep.mubr.f32.mxu0 0.0
  %1687 = vmatmul.mubr.f32.gmra.mxu0 %v1591
  %v1688 = vpop.f32.mrf.mxu0
  %v1689 = vadd.f32 0.0, %v1688
  %v1690 = vpop.f32.mrf.mxu0
  %1691 = vmatprep.mubr.f32.mxu0 0.0
  %1692 = vmatmul.mubr.f32.gmra.mxu0 %v1594
  %v1693 = vpop.f32.mrf.mxu0
  %v1694 = vadd.f32 0.0, %v1693
  %v1695 = vpop.f32.mrf.mxu0
  %1696 = vmatprep.mubr.f32.mxu0 0.0
  %1697 = vmatmul.mubr.f32.gmra.mxu0 %v1597
  %v1698 = vpop.f32.mrf.mxu0
  %v1699 = vadd.f32 0.0, %v1698
  %v1700 = vpop.f32.mrf.mxu0
  %1701 = vmatprep.mubr.f32.mxu0 0.0
  %1702 = vmatmul.mubr.f32.gmra.mxu0 %v1600
  %v1703 = vpop.f32.mrf.mxu0
  %v1704 = vadd.f32 0.0, %v1703
  %v1705 = vpop.f32.mrf.mxu0
  %1706 = vdwg.mxu0
  %v1708 = vsel %vm766, %v1554, 0
  %v1711 = vsel %vm766, %v1555, 0
  %v1714 = vsel %vm766, %v1556, 0
  %v1717 = vsel %vm766, %v1557, 0
  %v1720 = vsel %vm766, %v1558, 0
  %v1723 = vsel %vm766, %v1559, 0
  %v1726 = vsel %vm766, %v1560, 0
  %v1729 = vsel %vm766, %v1561, 0
  %1731 = vmatprep.subr.mxu0 0.0
  %1732 = vmatpush1.msra.mxu0 0.0
  %1733 = vmatprep.subr.mxu0 0.0
  %1734 = vmatpush1.msra.mxu0 0.0
  %1735 = vmatprep.subr.mxu0 0.0
  %1736 = vmatpush1.msra.mxu0 0.0
  %1737 = vmatprep.subr.mxu0 0.0
  %1738 = vmatpush1.msra.mxu0 0.0
  %1739 = vmatprep.subr.mxu0 0.0
  %1740 = vmatpush1.msra.mxu0 0.0
  %1741 = vmatprep.subr.mxu0 0.0
  %1742 = vmatpush1.msra.mxu0 0.0
  %1743 = vmatprep.subr.mxu0 0.0
  %1744 = vmatpush1.msra.mxu0 0.0
  %1745 = vmatprep.subr.mxu0 0.0
  %1746 = vmatpush1.msra.mxu0 0.0
  %1747 = vmatprep.subr.mxu0 0.0
  %1748 = vmatpush1.msra.mxu0 %v128
  %1749 = vmatprep.subr.mxu0 0.0
  %1750 = vmatpush1.msra.mxu0 %v127
  %1751 = vmatprep.subr.mxu0 0.0
  %1752 = vmatpush1.msra.mxu0 %v126
  %1753 = vmatprep.subr.mxu0 0.0
  %1754 = vmatpush1.msra.mxu0 %v125
  %1755 = vmatprep.subr.mxu0 0.0
  %1756 = vmatpush1.msra.mxu0 %v124
  %1757 = vmatprep.subr.mxu0 0.0
  %1758 = vmatpush1.msra.mxu0 %v123
  %1759 = vmatprep.subr.mxu0 0.0
  %1760 = vmatpush1.msra.mxu0 %v122
  %1761 = vmatprep.subr.mxu0 0.0
  %1762 = vmatpush1.msra.mxu0 %v121
  %1763 = vmatprep.subr.mxu0 0.0
  %1764 = vmatpush2.msra.mxu0 0.0
  %1765 = vmatprep.subr.mxu0 0.0
  %1766 = vmatpush2.msra.mxu0 0.0
  %1767 = vmatprep.subr.mxu0 0.0
  %1768 = vmatpush2.msra.mxu0 0.0
  %1769 = vmatprep.subr.mxu0 0.0
  %1770 = vmatpush2.msra.mxu0 0.0
  %1771 = vmatprep.subr.mxu0 0.0
  %1772 = vmatpush2.msra.mxu0 0.0
  %1773 = vmatprep.subr.mxu0 0.0
  %1774 = vmatpush2.msra.mxu0 0.0
  %1775 = vmatprep.subr.mxu0 0.0
  %1776 = vmatpush2.msra.mxu0 0.0
  %1777 = vmatprep.subr.mxu0 0.0
  %1778 = vmatpush2.msra.mxu0 0.0
  %1779 = vmatprep.subr.mxu0 0.0
  %1780 = vmatpush2.msra.mxu0 0.0
  %1781 = vmatprep.subr.mxu0 0.0
  %1782 = vmatpush2.msra.mxu0 0.0
  %1783 = vmatprep.subr.mxu0 0.0
  %1784 = vmatpush2.msra.mxu0 0.0
  %1785 = vmatprep.subr.mxu0 0.0
  %1786 = vmatpush2.msra.mxu0 0.0
  %1787 = vmatprep.subr.mxu0 0.0
  %1788 = vmatpush2.msra.mxu0 0.0
  %1789 = vmatprep.subr.mxu0 0.0
  %1790 = vmatpush2.msra.mxu0 0.0
  %1791 = vmatprep.subr.mxu0 0.0
  %1792 = vmatpush2.msra.mxu0 0.0
  %1793 = vmatprep.subr.mxu0 0.0
  %1794 = vmatpush2.msra.mxu0 0.0
  %1795 = vmatprep.mubr.f32.mxu0 0.0
  %1796 = vmatmul.mubr.f32.gmra.mxu0 %v1708
  %v1797 = vpop.f32.mrf.mxu0
  %v1798 = vadd.f32 0.0, %v1797
  %v1799 = vpop.f32.mrf.mxu0
  %1800 = vmatprep.mubr.f32.mxu0 0.0
  %1801 = vmatmul.mubr.f32.gmra.mxu0 %v1711
  %v1802 = vpop.f32.mrf.mxu0
  %v1803 = vadd.f32 0.0, %v1802
  %v1804 = vpop.f32.mrf.mxu0
  %1805 = vmatprep.mubr.f32.mxu0 0.0
  %1806 = vmatmul.mubr.f32.gmra.mxu0 %v1714
  %v1807 = vpop.f32.mrf.mxu0
  %v1808 = vadd.f32 0.0, %v1807
  %v1809 = vpop.f32.mrf.mxu0
  %1810 = vmatprep.mubr.f32.mxu0 0.0
  %1811 = vmatmul.mubr.f32.gmra.mxu0 %v1717
  %v1812 = vpop.f32.mrf.mxu0
  %v1813 = vadd.f32 0.0, %v1812
  %v1814 = vpop.f32.mrf.mxu0
  %1815 = vmatprep.mubr.f32.mxu0 0.0
  %1816 = vmatmul.mubr.f32.gmra.mxu0 %v1720
  %v1817 = vpop.f32.mrf.mxu0
  %v1818 = vadd.f32 0.0, %v1817
  %v1819 = vpop.f32.mrf.mxu0
  %1820 = vmatprep.mubr.f32.mxu0 0.0
  %1821 = vmatmul.mubr.f32.gmra.mxu0 %v1723
  %v1822 = vpop.f32.mrf.mxu0
  %v1823 = vadd.f32 0.0, %v1822
  %v1824 = vpop.f32.mrf.mxu0
  %1825 = vmatprep.mubr.f32.mxu0 0.0
  %1826 = vmatmul.mubr.f32.gmra.mxu0 %v1726
  %v1827 = vpop.f32.mrf.mxu0
  %v1828 = vadd.f32 0.0, %v1827
  %v1829 = vpop.f32.mrf.mxu0
  %1830 = vmatprep.mubr.f32.mxu0 0.0
  %1831 = vmatmul.mubr.f32.gmra.mxu0 %v1729
  %v1832 = vpop.f32.mrf.mxu0
  %v1833 = vadd.f32 0.0, %v1832
  %v1834 = vpop.f32.mrf.mxu0
  %1835 = vdwg.mxu0
  %v1837 = vsel %vm766, %v1562, 0
  %v1840 = vsel %vm766, %v1563, 0
  %v1843 = vsel %vm766, %v1564, 0
  %v1846 = vsel %vm766, %v1565, 0
  %v1849 = vsel %vm766, %v1566, 0
  %v1852 = vsel %vm766, %v1567, 0
  %v1855 = vsel %vm766, %v1568, 0
  %v1858 = vsel %vm766, %v1569, 0
  %1860 = vmatprep.subr.mxu0 0.0
  %1861 = vmatpush1.msra.mxu0 0.0
  %1862 = vmatprep.subr.mxu0 0.0
  %1863 = vmatpush1.msra.mxu0 0.0
  %1864 = vmatprep.subr.mxu0 0.0
  %1865 = vmatpush1.msra.mxu0 0.0
  %1866 = vmatprep.subr.mxu0 0.0
  %1867 = vmatpush1.msra.mxu0 0.0
  %1868 = vmatprep.subr.mxu0 0.0
  %1869 = vmatpush1.msra.mxu0 0.0
  %1870 = vmatprep.subr.mxu0 0.0
  %1871 = vmatpush1.msra.mxu0 0.0
  %1872 = vmatprep.subr.mxu0 0.0
  %1873 = vmatpush1.msra.mxu0 0.0
  %1874 = vmatprep.subr.mxu0 0.0
  %1875 = vmatpush1.msra.mxu0 0.0
  %1876 = vmatprep.subr.mxu0 0.0
  %1877 = vmatpush1.msra.mxu0 %v136
  %1878 = vmatprep.subr.mxu0 0.0
  %1879 = vmatpush1.msra.mxu0 %v135
  %1880 = vmatprep.subr.mxu0 0.0
  %1881 = vmatpush1.msra.mxu0 %v134
  %1882 = vmatprep.subr.mxu0 0.0
  %1883 = vmatpush1.msra.mxu0 %v133
  %1884 = vmatprep.subr.mxu0 0.0
  %1885 = vmatpush1.msra.mxu0 %v132
  %1886 = vmatprep.subr.mxu0 0.0
  %1887 = vmatpush1.msra.mxu0 %v131
  %1888 = vmatprep.subr.mxu0 0.0
  %1889 = vmatpush1.msra.mxu0 %v130
  %1890 = vmatprep.subr.mxu0 0.0
  %1891 = vmatpush1.msra.mxu0 %v129
  %1892 = vmatprep.subr.mxu0 0.0
  %1893 = vmatpush2.msra.mxu0 0.0
  %1894 = vmatprep.subr.mxu0 0.0
  %1895 = vmatpush2.msra.mxu0 0.0
  %1896 = vmatprep.subr.mxu0 0.0
  %1897 = vmatpush2.msra.mxu0 0.0
  %1898 = vmatprep.subr.mxu0 0.0
  %1899 = vmatpush2.msra.mxu0 0.0
  %1900 = vmatprep.subr.mxu0 0.0
  %1901 = vmatpush2.msra.mxu0 0.0
  %1902 = vmatprep.subr.mxu0 0.0
  %1903 = vmatpush2.msra.mxu0 0.0
  %1904 = vmatprep.subr.mxu0 0.0
  %1905 = vmatpush2.msra.mxu0 0.0
  %1906 = vmatprep.subr.mxu0 0.0
  %1907 = vmatpush2.msra.mxu0 0.0
  %1908 = vmatprep.subr.mxu0 0.0
  %1909 = vmatpush2.msra.mxu0 0.0
  %1910 = vmatprep.subr.mxu0 0.0
  %1911 = vmatpush2.msra.mxu0 0.0
  %1912 = vmatprep.subr.mxu0 0.0
  %1913 = vmatpush2.msra.mxu0 0.0
  %1914 = vmatprep.subr.mxu0 0.0
  %1915 = vmatpush2.msra.mxu0 0.0
  %1916 = vmatprep.subr.mxu0 0.0
  %1917 = vmatpush2.msra.mxu0 0.0
  %1918 = vmatprep.subr.mxu0 0.0
  %1919 = vmatpush2.msra.mxu0 0.0
  %1920 = vmatprep.subr.mxu0 0.0
  %1921 = vmatpush2.msra.mxu0 0.0
  %1922 = vmatprep.subr.mxu0 0.0
  %1923 = vmatpush2.msra.mxu0 0.0
  %1924 = vmatprep.mubr.f32.mxu0 0.0
  %1925 = vmatmul.mubr.f32.gmra.mxu0 %v1837
  %v1926 = vpop.f32.mrf.mxu0
  %v1927 = vadd.f32 0.0, %v1926
  %v1928 = vpop.f32.mrf.mxu0
  %1929 = vmatprep.mubr.f32.mxu0 0.0
  %1930 = vmatmul.mubr.f32.gmra.mxu0 %v1840
  %v1931 = vpop.f32.mrf.mxu0
  %v1932 = vadd.f32 0.0, %v1931
  %v1933 = vpop.f32.mrf.mxu0
  %1934 = vmatprep.mubr.f32.mxu0 0.0
  %1935 = vmatmul.mubr.f32.gmra.mxu0 %v1843
  %v1936 = vpop.f32.mrf.mxu0
  %v1937 = vadd.f32 0.0, %v1936
  %v1938 = vpop.f32.mrf.mxu0
  %1939 = vmatprep.mubr.f32.mxu0 0.0
  %1940 = vmatmul.mubr.f32.gmra.mxu0 %v1846
  %v1941 = vpop.f32.mrf.mxu0
  %v1942 = vadd.f32 0.0, %v1941
  %v1943 = vpop.f32.mrf.mxu0
  %1944 = vmatprep.mubr.f32.mxu0 0.0
  %1945 = vmatmul.mubr.f32.gmra.mxu0 %v1849
  %v1946 = vpop.f32.mrf.mxu0
  %v1947 = vadd.f32 0.0, %v1946
  %v1948 = vpop.f32.mrf.mxu0
  %1949 = vmatprep.mubr.f32.mxu0 0.0
  %1950 = vmatmul.mubr.f32.gmra.mxu0 %v1852
  %v1951 = vpop.f32.mrf.mxu0
  %v1952 = vadd.f32 0.0, %v1951
  %v1953 = vpop.f32.mrf.mxu0
  %1954 = vmatprep.mubr.f32.mxu0 0.0
  %1955 = vmatmul.mubr.f32.gmra.mxu0 %v1855
  %v1956 = vpop.f32.mrf.mxu0
  %v1957 = vadd.f32 0.0, %v1956
  %v1958 = vpop.f32.mrf.mxu0
  %1959 = vmatprep.mubr.f32.mxu0 0.0
  %1960 = vmatmul.mubr.f32.gmra.mxu0 %v1858
  %v1961 = vpop.f32.mrf.mxu0
  %v1962 = vadd.f32 0.0, %v1961
  %v1963 = vpop.f32.mrf.mxu0
  %1964 = vdwg.mxu0
  %v1966 = vsel %vm766, %v1570, 0
  %v1969 = vsel %vm766, %v1571, 0
  %v1972 = vsel %vm766, %v1572, 0
  %v1975 = vsel %vm766, %v1573, 0
  %v1978 = vsel %vm766, %v1574, 0
  %v1981 = vsel %vm766, %v1575, 0
  %v1984 = vsel %vm766, %v1576, 0
  %v1987 = vsel %vm766, %v1577, 0
  %1989 = vmatprep.subr.mxu0 0.0
  %1990 = vmatpush1.msra.mxu0 0.0
  %1991 = vmatprep.subr.mxu0 0.0
  %1992 = vmatpush1.msra.mxu0 0.0
  %1993 = vmatprep.subr.mxu0 0.0
  %1994 = vmatpush1.msra.mxu0 0.0
  %1995 = vmatprep.subr.mxu0 0.0
  %1996 = vmatpush1.msra.mxu0 0.0
  %1997 = vmatprep.subr.mxu0 0.0
  %1998 = vmatpush1.msra.mxu0 0.0
  %1999 = vmatprep.subr.mxu0 0.0
  %2000 = vmatpush1.msra.mxu0 0.0
  %2001 = vmatprep.subr.mxu0 0.0
  %2002 = vmatpush1.msra.mxu0 0.0
  %2003 = vmatprep.subr.mxu0 0.0
  %2004 = vmatpush1.msra.mxu0 0.0
  %2005 = vmatprep.subr.mxu0 0.0
  %2006 = vmatpush1.msra.mxu0 %v144
  %2007 = vmatprep.subr.mxu0 0.0
  %2008 = vmatpush1.msra.mxu0 %v143
  %2009 = vmatprep.subr.mxu0 0.0
  %2010 = vmatpush1.msra.mxu0 %v142
  %2011 = vmatprep.subr.mxu0 0.0
  %2012 = vmatpush1.msra.mxu0 %v141
  %2013 = vmatprep.subr.mxu0 0.0
  %2014 = vmatpush1.msra.mxu0 %v140
  %2015 = vmatprep.subr.mxu0 0.0
  %2016 = vmatpush1.msra.mxu0 %v139
  %2017 = vmatprep.subr.mxu0 0.0
  %2018 = vmatpush1.msra.mxu0 %v138
  %2019 = vmatprep.subr.mxu0 0.0
  %2020 = vmatpush1.msra.mxu0 %v137
  %2021 = vmatprep.subr.mxu0 0.0
  %2022 = vmatpush2.msra.mxu0 0.0
  %2023 = vmatprep.subr.mxu0 0.0
  %2024 = vmatpush2.msra.mxu0 0.0
  %2025 = vmatprep.subr.mxu0 0.0
  %2026 = vmatpush2.msra.mxu0 0.0
  %2027 = vmatprep.subr.mxu0 0.0
  %2028 = vmatpush2.msra.mxu0 0.0
  %2029 = vmatprep.subr.mxu0 0.0
  %2030 = vmatpush2.msra.mxu0 0.0
  %2031 = vmatprep.subr.mxu0 0.0
  %2032 = vmatpush2.msra.mxu0 0.0
  %2033 = vmatprep.subr.mxu0 0.0
  %2034 = vmatpush2.msra.mxu0 0.0
  %2035 = vmatprep.subr.mxu0 0.0
  %2036 = vmatpush2.msra.mxu0 0.0
  %2037 = vmatprep.subr.mxu0 0.0
  %2038 = vmatpush2.msra.mxu0 0.0
  %2039 = vmatprep.subr.mxu0 0.0
  %2040 = vmatpush2.msra.mxu0 0.0
  %2041 = vmatprep.subr.mxu0 0.0
  %2042 = vmatpush2.msra.mxu0 0.0
  %2043 = vmatprep.subr.mxu0 0.0
  %2044 = vmatpush2.msra.mxu0 0.0
  %2045 = vmatprep.subr.mxu0 0.0
  %2046 = vmatpush2.msra.mxu0 0.0
  %2047 = vmatprep.subr.mxu0 0.0
  %2048 = vmatpush2.msra.mxu0 0.0
  %2049 = vmatprep.subr.mxu0 0.0
  %2050 = vmatpush2.msra.mxu0 0.0
  %2051 = vmatprep.subr.mxu0 0.0
  %2052 = vmatpush2.msra.mxu0 0.0
  %2053 = vmatprep.mubr.f32.mxu0 0.0
  %2054 = vmatmul.mubr.f32.gmra.mxu0 %v1966
  %v2055 = vpop.f32.mrf.mxu0
  %v2056 = vadd.f32 0.0, %v2055
  %v2057 = vpop.f32.mrf.mxu0
  %2058 = vmatprep.mubr.f32.mxu0 0.0
  %2059 = vmatmul.mubr.f32.gmra.mxu0 %v1969
  %v2060 = vpop.f32.mrf.mxu0
  %v2061 = vadd.f32 0.0, %v2060
  %v2062 = vpop.f32.mrf.mxu0
  %2063 = vmatprep.mubr.f32.mxu0 0.0
  %2064 = vmatmul.mubr.f32.gmra.mxu0 %v1972
  %v2065 = vpop.f32.mrf.mxu0
  %v2066 = vadd.f32 0.0, %v2065
  %v2067 = vpop.f32.mrf.mxu0
  %2068 = vmatprep.mubr.f32.mxu0 0.0
  %2069 = vmatmul.mubr.f32.gmra.mxu0 %v1975
  %v2070 = vpop.f32.mrf.mxu0
  %v2071 = vadd.f32 0.0, %v2070
  %v2072 = vpop.f32.mrf.mxu0
  %2073 = vmatprep.mubr.f32.mxu0 0.0
  %2074 = vmatmul.mubr.f32.gmra.mxu0 %v1978
  %v2075 = vpop.f32.mrf.mxu0
  %v2076 = vadd.f32 0.0, %v2075
  %v2077 = vpop.f32.mrf.mxu0
  %2078 = vmatprep.mubr.f32.mxu0 0.0
  %2079 = vmatmul.mubr.f32.gmra.mxu0 %v1981
  %v2080 = vpop.f32.mrf.mxu0
  %v2081 = vadd.f32 0.0, %v2080
  %v2082 = vpop.f32.mrf.mxu0
  %2083 = vmatprep.mubr.f32.mxu0 0.0
  %2084 = vmatmul.mubr.f32.gmra.mxu0 %v1984
  %v2085 = vpop.f32.mrf.mxu0
  %v2086 = vadd.f32 0.0, %v2085
  %v2087 = vpop.f32.mrf.mxu0
  %2088 = vmatprep.mubr.f32.mxu0 0.0
  %2089 = vmatmul.mubr.f32.gmra.mxu0 %v1987
  %v2090 = vpop.f32.mrf.mxu0
  %v2091 = vadd.f32 0.0, %v2090
  %v2092 = vpop.f32.mrf.mxu0
  %2093 = vdwg.mxu0
  %2094 = vst.msk [vmem:[%s4] sm:$0xff] %vm153, %v1669
  %2095 = vst.msk [vmem:[%s4 + $0x8] sm:$0xff] %vm153, %v1674
  %2096 = vst.msk [vmem:[%s4 + $0x10] sm:$0xff] %vm153, %v1679
  %2097 = vst.msk [vmem:[%s4 + $0x18] sm:$0xff] %vm153, %v1684
  %2098 = vst.msk [vmem:[%s4 + $0x20] sm:$0xff] %vm153, %v1689
  %2099 = vst.msk [vmem:[%s4 + $0x28] sm:$0xff] %vm153, %v1694
  %2100 = vst.msk [vmem:[%s4 + $0x30] sm:$0xff] %vm153, %v1699
  %2101 = vst.msk [vmem:[%s4 + $0x38] sm:$0xff] %vm153, %v1704
  %2102 = vst.msk [vmem:[%s4 + $0x40] sm:$0xff] %vm153, %v1798
  %2103 = vst.msk [vmem:[%s4 + $0x48] sm:$0xff] %vm153, %v1803
  %2104 = vst.msk [vmem:[%s4 + $0x50] sm:$0xff] %vm153, %v1808
  %2105 = vst.msk [vmem:[%s4 + $0x58] sm:$0xff] %vm153, %v1813
  %2106 = vst.msk [vmem:[%s4 + $0x60] sm:$0xff] %vm153, %v1818
  %2107 = vst.msk [vmem:[%s4 + $0x68] sm:$0xff] %vm153, %v1823
  %2108 = vst.msk [vmem:[%s4 + $0x70] sm:$0xff] %vm153, %v1828
  %2109 = vst.msk [vmem:[%s4 + $0x78] sm:$0xff] %vm153, %v1833
  %2110 = vst.msk [vmem:[%s4 + $0x80] sm:$0xff] %vm153, %v1927
  %2111 = vst.msk [vmem:[%s4 + $0x88] sm:$0xff] %vm153, %v1932
  %2112 = vst.msk [vmem:[%s4 + $0x90] sm:$0xff] %vm153, %v1937
  %2113 = vst.msk [vmem:[%s4 + $0x98] sm:$0xff] %vm153, %v1942
  %2114 = vst.msk [vmem:[%s4 + $0xa0] sm:$0xff] %vm153, %v1947
  %2115 = vst.msk [vmem:[%s4 + $0xa8] sm:$0xff] %vm153, %v1952
  %2116 = vst.msk [vmem:[%s4 + $0xb0] sm:$0xff] %vm153, %v1957
  %2117 = vst.msk [vmem:[%s4 + $0xb8] sm:$0xff] %vm153, %v1962
  %2118 = vst.msk [vmem:[%s4 + $0xc0] sm:$0xff] %vm153, %v2056
  %2119 = vst.msk [vmem:[%s4 + $0xc8] sm:$0xff] %vm153, %v2061
  %2120 = vst.msk [vmem:[%s4 + $0xd0] sm:$0xff] %vm153, %v2066
  %2121 = vst.msk [vmem:[%s4 + $0xd8] sm:$0xff] %vm153, %v2071
  %2122 = vst.msk [vmem:[%s4 + $0xe0] sm:$0xff] %vm153, %v2076
  %2123 = vst.msk [vmem:[%s4 + $0xe8] sm:$0xff] %vm153, %v2081
  %2124 = vst.msk [vmem:[%s4 + $0xf0] sm:$0xff] %vm153, %v2086
  %2125 = vst.msk [vmem:[%s4 + $0xf8] sm:$0xff] %vm153, %v2091
  // Predicated region
  $region18: #{tpu_custom_call.1} parent=0 // pred_check
    _
  $region19: #{tpu_custom_call.1} parent=0 // pred_check_branch
    %2127 = sbr.rel (0) target = $region21
  $region20: #{tpu_custom_call.1} parent=0 // pred_region
    _
  $region21: #{tpu_custom_call.1} parent=0 // pred_fallthru
    _
  // Predicated region
  $region22: #{tpu_custom_call.1} parent=0 // pred_check
    _
  $region23: #{tpu_custom_call.1} parent=0 // pred_check_branch
    %2129 = sbr.rel (0) target = $region25
  $region24: #{tpu_custom_call.1} parent=0 // pred_region
    _
  $region25: #{tpu_custom_call.1} parent=0 // pred_fallthru
    _

</llo_original>
